<compile_context>
chip_gen: v6e
topology: v6e:2x2x1
jax: 0.10.0
libtpu: 0.0.40
codegen_flags: <defaults>
</compile_context>

<pallas_src>
import jax
import jax.numpy as jnp
from jax.experimental import pallas as pl
from jax.experimental.pallas import tpu as pltpu

BN_EPS = 1e-5
TEMP = 1e-4                      # asym_loss hard-codes temp = 0.0001
INV_TEMP = 1.0 / TEMP            # multiply instead of divide
LAMBD = 2.3
BETA = 0.8
_F32_TINY = 1.1754943508222875e-38   # torch clamp_probs lower bound (f32 tiny)


# --------------------------------------------------------------------------
# In-kernel math helpers
# --------------------------------------------------------------------------
def _gelu(x):
    # tanh-approx GELU: the transcendental goes to the EUP slot instead of a
    # long VALU polynomial chain.  |err| vs exact erf-GELU is ~1e-3.
    c = 0.7978845608028654
    return 0.5 * x * (1.0 + jnp.tanh(c * (x + 0.044715 * x * x * x)))


# --------------------------------------------------------------------------
# Single fused kernel: both-view MLP forwards + both asym losses -> scalar
# --------------------------------------------------------------------------
def _make_kernel(batch, hid):
    B = batch

    def _bn_per_view(y, gamma, beta):
        # y: (2B, N).  BN stats are computed independently for each view
        # (rows [0:B] from z1, rows [B:2B] from z2) -- exactly like two
        # separate train-mode forward calls.  Two-pass centered variance.
        def norm(v):
            mean = jnp.mean(v, axis=0, keepdims=True)
            c = v - mean
            var = jnp.mean(c * c, axis=0, keepdims=True)   # biased variance
            return c * jax.lax.rsqrt(var + BN_EPS)

        yn = jnp.concatenate([norm(y[:B]), norm(y[B:])], axis=0)
        return yn * gamma + beta

    def kernel(z1_ref, z2_ref, w1_ref, w23_ref, tw3_ref, p_ref, o_ref):
        def pget(row):                       # one (1, N) row of the param pack
            return p_ref[row:row + 1, :]

        def bn_act(y, prow, gelu):
            y = y + pget(prow)               # linear bias
            y = _bn_per_view(y, pget(prow + 1), pget(prow + 2))
            return _gelu(y) if gelu else y

        # Stack the two views once; every layer below runs on (2B, ·).
        z = jnp.concatenate([z1_ref[...], z2_ref[...]], axis=0)
        zb = z.astype(jnp.bfloat16)

        # ---- fused layer 1: [teacher-L1 | student-L1] in one matmul --------
        y1 = jnp.dot(zb, w1_ref[...], preferred_element_type=jnp.float32)
        h_t = bn_act(y1[:, :hid], 0, True)       # teacher L1 (+GELU)
        h_s = bn_act(y1[:, hid:], 9, False)      # student L1 (no activation)

        # ---- teacher L2 (bf16) and L3 (f32: logits feed softmax at 1e4) ----
        h_t = bn_act(jnp.dot(h_t.astype(jnp.bfloat16), w23_ref[0],
                             preferred_element_type=jnp.float32), 3, True)
        t = bn_act(jnp.dot(h_t, tw3_ref[...],
                           preferred_element_type=jnp.float32), 6, True)

        # ---- student L2 / L3 (bf16) ----------------------------------------
        h_s = bn_act(jnp.dot(h_s.astype(jnp.bfloat16), w23_ref[1],
                             preferred_element_type=jnp.float32), 12, False)
        s = bn_act(jnp.dot(h_s.astype(jnp.bfloat16), w23_ref[2],
                           preferred_element_type=jnp.float32), 15, False)

        # ---- loss epilogue: shared softmax/log-softmax statistics ----------
        # Teacher: one pass over the stacked (2B, N) logits gives both views'
        # probs q and log_softmax; student similarly.
        l = t * INV_TEMP
        m = jnp.max(l, axis=-1, keepdims=True)
        e = jnp.exp(l - m)
        ssum = jnp.sum(e, axis=-1, keepdims=True)
        q = e * pl.reciprocal(ssum, approx=True)       # softmax probs (EUP recip)
        logsm_t = (l - m) - jnp.log(ssum)              # log_softmax(teacher/temp)

        ms = jnp.max(s, axis=-1, keepdims=True)
        es = jnp.exp(s - ms)
        logsm_s = (s - ms) - jnp.log(jnp.sum(es, axis=-1, keepdims=True))

        q1, q2 = q[:B], q[B:]
        lt1, lt2 = logsm_t[:B], logsm_t[B:]
        ls1, ls2 = logsm_s[:B], logsm_s[B:]

        def asym(q_a, logsm_t_b, logsm_s_b):
            # mxml = -entropy(Categorical(probs = q_a.mean(0)))
            q_bar = jnp.mean(q_a, axis=0, keepdims=True)
            mxml = jnp.sum(q_bar * jnp.log(jnp.maximum(q_bar, _F32_TINY)))
            det_inv = jnp.mean(
                jnp.sum(q_a * logsm_t_b, axis=-1, keepdims=True))
            dstl = jnp.mean(
                jnp.sum(q_a * logsm_s_b, axis=-1, keepdims=True))
            return LAMBD * mxml - BETA * det_inv - dstl

        loss_12 = asym(q1, lt2, ls2)                   # asym_loss(z1, z2)
        loss_21 = asym(q2, lt1, ls1)                   # asym_loss(z2, z1)
        o_ref[0, 0] = (loss_12 + loss_21) * 0.5

    return kernel


def dissl_forward(params, z1, z2):
    batch = z1.shape[0]
    hid = params["w23"].shape[-1]
    vmem = pl.BlockSpec(memory_space=pltpu.MemorySpace.VMEM)
    out = pl.pallas_call(
        _make_kernel(batch, hid),
        out_shape=jax.ShapeDtypeStruct((1, 1), jnp.float32),
        in_specs=[vmem] * 6,
        out_specs=pl.BlockSpec(memory_space=pltpu.MemorySpace.SMEM),
    )(z1, z2, params["w1"], params["w23"], params["tw3"], params["packs"])
    return out[0, 0]


# --------------------------------------------------------------------------
# Parameter init (deterministic, PyTorch-Linear-style uniform bounds),
# packed into the kernel-facing layout at init time (no per-call repacking).
# --------------------------------------------------------------------------
def init_dissl_params(key, z_dim, n_equiv, hidden_dim):
    # NOTE: StudentNet in the reference applies BatchNorm1d(out_dim) to a
    # hidden_dim-wide activation; it only runs when hidden_dim == n_equiv.
    assert hidden_dim == n_equiv, "StudentNet as written needs hidden_dim == n_equiv"
    keys = jax.random.split(key, 6)

    def lin(k, fan_in, fan_out):
        kw, kb = jax.random.split(k)
        bound = 1.0 / (fan_in ** 0.5)
        w = jax.random.uniform(kw, (fan_in, fan_out), jnp.float32, -bound, bound)
        b = jax.random.uniform(kb, (fan_out,), jnp.float32, -bound, bound)
        gamma = jnp.ones((fan_out,), jnp.float32)
        beta = jnp.zeros((fan_out,), jnp.float32)
        return w, jnp.stack([b, gamma, beta], axis=0)     # pack (3, fan_out)

    tw1, tp1 = lin(keys[0], z_dim, hidden_dim)
    tw2, tp2 = lin(keys[1], hidden_dim, hidden_dim)
    tw3, tp3 = lin(keys[2], hidden_dim, n_equiv)
    sw1, sp1 = lin(keys[3], z_dim, hidden_dim)
    sw2, sp2 = lin(keys[4], hidden_dim, hidden_dim)
    sw3, sp3 = lin(keys[5], hidden_dim, n_equiv)

    return {
        # layer 1: [teacher | student] fused along N, MXU-facing, bf16
        "w1": jnp.concatenate([tw1, sw1], axis=1).astype(jnp.bfloat16),
        # [teacher L2, student L2, student L3] stacked, bf16
        "w23": jnp.stack([tw2, sw2, sw3], axis=0).astype(jnp.bfloat16),
        # teacher L3 kept f32: its logits are scaled by 1/temp = 1e4
        "tw3": tw3,
        # (18, N) f32: [bias, gamma, beta] for {tL1, tL2, tL3, sL1, sL2, sL3}
        "packs": jnp.concatenate([tp1, tp2, tp3, sp1, sp2, sp3], axis=0),
    }


if __name__ == "__main__":
    B, Z_DIM, HIDDEN, N_EQUIV = 8, 128, 256, 256
    key = jax.random.PRNGKey(0)
    kp, k1, k2 = jax.random.split(key, 3)
    params = init_dissl_params(kp, Z_DIM, N_EQUIV, HIDDEN)
    z1 = jax.random.normal(k1, (B, Z_DIM), jnp.float32)
    z2 = jax.random.normal(k2, (B, Z_DIM), jnp.float32)

    loss = jax.jit(dissl_forward)(params, z1, z2)
    loss = jax.block_until_ready(loss)
    assert loss.shape == () and bool(jnp.isfinite(loss))
    print("KERNEL_OK")
</pallas_src>

<mosaic_0001>
module attributes {stable_mosaic.version = 11 : i64} {
  func.func @kernel(%arg0: memref<8x128xf32, #tpu.memory_space<vmem>>, %arg1: memref<8x128xf32, #tpu.memory_space<vmem>>, %arg2: memref<128x512xbf16, #tpu.memory_space<vmem>>, %arg3: memref<3x256x256xbf16, #tpu.memory_space<vmem>>, %arg4: memref<256x256xf32, #tpu.memory_space<vmem>>, %arg5: memref<18x256xf32, #tpu.memory_space<vmem>>, %arg6: memref<1x1xf32, #tpu.memory_space<smem>>) attributes {dimension_semantics = [], scalar_prefetch = 0 : i64, scratch_operands = 0 : i64, tpu.core_type = #tpu.core_type<tc>} {
    %c0 = arith.constant 0 : index
    %c0_0 = arith.constant 0 : index
    %0 = vector.load %arg0[%c0, %c0_0] : memref<8x128xf32, #tpu.memory_space<vmem>>, vector<8x128xf32>
    %c0_1 = arith.constant 0 : index
    %c0_2 = arith.constant 0 : index
    %1 = vector.load %arg1[%c0_1, %c0_2] : memref<8x128xf32, #tpu.memory_space<vmem>>, vector<8x128xf32>
    %2 = tpu.concatenate %0, %1 in 0 : vector<8x128xf32>, vector<8x128xf32> -> vector<16x128xf32>
    %3 = arith.truncf %2 : vector<16x128xf32> to vector<16x128xbf16>
    %c0_3 = arith.constant 0 : index
    %c0_4 = arith.constant 0 : index
    %4 = vector.load %arg2[%c0_3, %c0_4] : memref<128x512xbf16, #tpu.memory_space<vmem>>, vector<128x512xbf16>
    %cst = arith.constant dense<0.000000e+00> : vector<16x512xf32>
    %5 = tpu.matmul %3, %4, %cst {dimension_numbers = #tpu.dot_dimension_numbers<[1], [0], [0], [1], [0, 0, 1, 1], [], []>} : vector<16x128xbf16>, vector<128x512xbf16>, vector<16x512xf32> -> vector<16x512xf32>
    %6 = vector.extract_strided_slice %5 {offsets = [0, 0], sizes = [16, 256], strides = [1, 1]} : vector<16x512xf32> to vector<16x256xf32>
    %c0_5 = arith.constant 0 : index
    %c0_6 = arith.constant 0 : index
    %7 = vector.load %arg5[%c0_5, %c0_6] : memref<18x256xf32, #tpu.memory_space<vmem>>, vector<1x256xf32>
    %8 = vector.broadcast %7 : vector<1x256xf32> to vector<16x256xf32>
    %9 = arith.addf %6, %8 : vector<16x256xf32>
    %c1 = arith.constant 1 : index
    %c0_7 = arith.constant 0 : index
    %10 = vector.load %arg5[%c1, %c0_7] : memref<18x256xf32, #tpu.memory_space<vmem>>, vector<1x256xf32>
    %c2 = arith.constant 2 : index
    %c0_8 = arith.constant 0 : index
    %11 = vector.load %arg5[%c2, %c0_8] : memref<18x256xf32, #tpu.memory_space<vmem>>, vector<1x256xf32>
    %12 = vector.extract_strided_slice %9 {offsets = [0, 0], sizes = [8, 256], strides = [1, 1]} : vector<16x256xf32> to vector<8x256xf32>
    %cst_9 = arith.constant dense<0.000000e+00> : vector<256xf32>
    %13 = vector.multi_reduction <add>, %12, %cst_9 [0] : vector<8x256xf32> to vector<256xf32>
    %14 = vector.shape_cast %13 : vector<256xf32> to vector<1x256xf32>
    %cst_10 = arith.constant 8.000000e+00 : f32
    %15 = vector.broadcast %cst_10 : f32 to vector<1x256xf32>
    %16 = arith.divf %14, %15 : vector<1x256xf32>
    %17 = vector.broadcast %16 : vector<1x256xf32> to vector<8x256xf32>
    %18 = arith.subf %12, %17 : vector<8x256xf32>
    %19 = arith.mulf %18, %18 : vector<8x256xf32>
    %cst_11 = arith.constant dense<0.000000e+00> : vector<256xf32>
    %20 = vector.multi_reduction <add>, %19, %cst_11 [0] : vector<8x256xf32> to vector<256xf32>
    %21 = vector.shape_cast %20 : vector<256xf32> to vector<1x256xf32>
    %cst_12 = arith.constant 8.000000e+00 : f32
    %22 = vector.broadcast %cst_12 : f32 to vector<1x256xf32>
    %23 = arith.divf %21, %22 : vector<1x256xf32>
    %cst_13 = arith.constant 9.99999974E-6 : f32
    %24 = vector.broadcast %cst_13 : f32 to vector<1x256xf32>
    %25 = arith.addf %23, %24 : vector<1x256xf32>
    %26 = math.rsqrt %25 : vector<1x256xf32>
    %27 = vector.broadcast %26 : vector<1x256xf32> to vector<8x256xf32>
    %28 = arith.mulf %18, %27 : vector<8x256xf32>
    %29 = vector.extract_strided_slice %9 {offsets = [8, 0], sizes = [8, 256], strides = [1, 1]} : vector<16x256xf32> to vector<8x256xf32>
    %cst_14 = arith.constant dense<0.000000e+00> : vector<256xf32>
    %30 = vector.multi_reduction <add>, %29, %cst_14 [0] : vector<8x256xf32> to vector<256xf32>
    %31 = vector.shape_cast %30 : vector<256xf32> to vector<1x256xf32>
    %cst_15 = arith.constant 8.000000e+00 : f32
    %32 = vector.broadcast %cst_15 : f32 to vector<1x256xf32>
    %33 = arith.divf %31, %32 : vector<1x256xf32>
    %34 = vector.broadcast %33 : vector<1x256xf32> to vector<8x256xf32>
    %35 = arith.subf %29, %34 : vector<8x256xf32>
    %36 = arith.mulf %35, %35 : vector<8x256xf32>
    %cst_16 = arith.constant dense<0.000000e+00> : vector<256xf32>
    %37 = vector.multi_reduction <add>, %36, %cst_16 [0] : vector<8x256xf32> to vector<256xf32>
    %38 = vector.shape_cast %37 : vector<256xf32> to vector<1x256xf32>
    %cst_17 = arith.constant 8.000000e+00 : f32
    %39 = vector.broadcast %cst_17 : f32 to vector<1x256xf32>
    %40 = arith.divf %38, %39 : vector<1x256xf32>
    %cst_18 = arith.constant 9.99999974E-6 : f32
    %41 = vector.broadcast %cst_18 : f32 to vector<1x256xf32>
    %42 = arith.addf %40, %41 : vector<1x256xf32>
    %43 = math.rsqrt %42 : vector<1x256xf32>
    %44 = vector.broadcast %43 : vector<1x256xf32> to vector<8x256xf32>
    %45 = arith.mulf %35, %44 : vector<8x256xf32>
    %46 = tpu.concatenate %28, %45 in 0 : vector<8x256xf32>, vector<8x256xf32> -> vector<16x256xf32>
    %47 = vector.broadcast %10 : vector<1x256xf32> to vector<16x256xf32>
    %48 = arith.mulf %46, %47 : vector<16x256xf32>
    %49 = vector.broadcast %11 : vector<1x256xf32> to vector<16x256xf32>
    %50 = arith.addf %48, %49 : vector<16x256xf32>
    %cst_19 = arith.constant 5.000000e-01 : f32
    %51 = vector.broadcast %cst_19 : f32 to vector<16x256xf32>
    %52 = arith.mulf %51, %50 : vector<16x256xf32>
    %cst_20 = arith.constant 4.471500e-02 : f32
    %53 = vector.broadcast %cst_20 : f32 to vector<16x256xf32>
    %54 = arith.mulf %53, %50 : vector<16x256xf32>
    %55 = arith.mulf %54, %50 : vector<16x256xf32>
    %56 = arith.mulf %55, %50 : vector<16x256xf32>
    %57 = arith.addf %50, %56 : vector<16x256xf32>
    %cst_21 = arith.constant 0.797884583 : f32
    %58 = vector.broadcast %cst_21 : f32 to vector<16x256xf32>
    %59 = arith.mulf %58, %57 : vector<16x256xf32>
    %60 = math.tanh %59 : vector<16x256xf32>
    %cst_22 = arith.constant 1.000000e+00 : f32
    %61 = vector.broadcast %cst_22 : f32 to vector<16x256xf32>
    %62 = arith.addf %61, %60 : vector<16x256xf32>
    %63 = arith.mulf %52, %62 : vector<16x256xf32>
    %64 = vector.extract_strided_slice %5 {offsets = [0, 256], sizes = [16, 256], strides = [1, 1]} : vector<16x512xf32> to vector<16x256xf32>
    %c9 = arith.constant 9 : index
    %c0_23 = arith.constant 0 : index
    %65 = vector.load %arg5[%c9, %c0_23] : memref<18x256xf32, #tpu.memory_space<vmem>>, vector<1x256xf32>
    %66 = vector.broadcast %65 : vector<1x256xf32> to vector<16x256xf32>
    %67 = arith.addf %64, %66 : vector<16x256xf32>
    %c10 = arith.constant 10 : index
    %c0_24 = arith.constant 0 : index
    %68 = vector.load %arg5[%c10, %c0_24] : memref<18x256xf32, #tpu.memory_space<vmem>>, vector<1x256xf32>
    %c11 = arith.constant 11 : index
    %c0_25 = arith.constant 0 : index
    %69 = vector.load %arg5[%c11, %c0_25] : memref<18x256xf32, #tpu.memory_space<vmem>>, vector<1x256xf32>
    %70 = vector.extract_strided_slice %67 {offsets = [0, 0], sizes = [8, 256], strides = [1, 1]} : vector<16x256xf32> to vector<8x256xf32>
    %cst_26 = arith.constant dense<0.000000e+00> : vector<256xf32>
    %71 = vector.multi_reduction <add>, %70, %cst_26 [0] : vector<8x256xf32> to vector<256xf32>
    %72 = vector.shape_cast %71 : vector<256xf32> to vector<1x256xf32>
    %cst_27 = arith.constant 8.000000e+00 : f32
    %73 = vector.broadcast %cst_27 : f32 to vector<1x256xf32>
    %74 = arith.divf %72, %73 : vector<1x256xf32>
    %75 = vector.broadcast %74 : vector<1x256xf32> to vector<8x256xf32>
    %76 = arith.subf %70, %75 : vector<8x256xf32>
    %77 = arith.mulf %76, %76 : vector<8x256xf32>
    %cst_28 = arith.constant dense<0.000000e+00> : vector<256xf32>
    %78 = vector.multi_reduction <add>, %77, %cst_28 [0] : vector<8x256xf32> to vector<256xf32>
    %79 = vector.shape_cast %78 : vector<256xf32> to vector<1x256xf32>
    %cst_29 = arith.constant 8.000000e+00 : f32
    %80 = vector.broadcast %cst_29 : f32 to vector<1x256xf32>
    %81 = arith.divf %79, %80 : vector<1x256xf32>
    %cst_30 = arith.constant 9.99999974E-6 : f32
    %82 = vector.broadcast %cst_30 : f32 to vector<1x256xf32>
    %83 = arith.addf %81, %82 : vector<1x256xf32>
    %84 = math.rsqrt %83 : vector<1x256xf32>
    %85 = vector.broadcast %84 : vector<1x256xf32> to vector<8x256xf32>
    %86 = arith.mulf %76, %85 : vector<8x256xf32>
    %87 = vector.extract_strided_slice %67 {offsets = [8, 0], sizes = [8, 256], strides = [1, 1]} : vector<16x256xf32> to vector<8x256xf32>
    %cst_31 = arith.constant dense<0.000000e+00> : vector<256xf32>
    %88 = vector.multi_reduction <add>, %87, %cst_31 [0] : vector<8x256xf32> to vector<256xf32>
    %89 = vector.shape_cast %88 : vector<256xf32> to vector<1x256xf32>
    %cst_32 = arith.constant 8.000000e+00 : f32
    %90 = vector.broadcast %cst_32 : f32 to vector<1x256xf32>
    %91 = arith.divf %89, %90 : vector<1x256xf32>
    %92 = vector.broadcast %91 : vector<1x256xf32> to vector<8x256xf32>
    %93 = arith.subf %87, %92 : vector<8x256xf32>
    %94 = arith.mulf %93, %93 : vector<8x256xf32>
    %cst_33 = arith.constant dense<0.000000e+00> : vector<256xf32>
    %95 = vector.multi_reduction <add>, %94, %cst_33 [0] : vector<8x256xf32> to vector<256xf32>
    %96 = vector.shape_cast %95 : vector<256xf32> to vector<1x256xf32>
    %cst_34 = arith.constant 8.000000e+00 : f32
    %97 = vector.broadcast %cst_34 : f32 to vector<1x256xf32>
    %98 = arith.divf %96, %97 : vector<1x256xf32>
    %cst_35 = arith.constant 9.99999974E-6 : f32
    %99 = vector.broadcast %cst_35 : f32 to vector<1x256xf32>
    %100 = arith.addf %98, %99 : vector<1x256xf32>
    %101 = math.rsqrt %100 : vector<1x256xf32>
    %102 = vector.broadcast %101 : vector<1x256xf32> to vector<8x256xf32>
    %103 = arith.mulf %93, %102 : vector<8x256xf32>
    %104 = tpu.concatenate %86, %103 in 0 : vector<8x256xf32>, vector<8x256xf32> -> vector<16x256xf32>
    %105 = vector.broadcast %68 : vector<1x256xf32> to vector<16x256xf32>
    %106 = arith.mulf %104, %105 : vector<16x256xf32>
    %107 = vector.broadcast %69 : vector<1x256xf32> to vector<16x256xf32>
    %108 = arith.addf %106, %107 : vector<16x256xf32>
    %109 = arith.truncf %63 : vector<16x256xf32> to vector<16x256xbf16>
    %c0_36 = arith.constant 0 : index
    %c0_37 = arith.constant 0 : index
    %c0_38 = arith.constant 0 : index
    %110 = vector.load %arg3[%c0_36, %c0_37, %c0_38] : memref<3x256x256xbf16, #tpu.memory_space<vmem>>, vector<1x256x256xbf16>
    %111 = vector.shape_cast %110 : vector<1x256x256xbf16> to vector<256x256xbf16>
    %cst_39 = arith.constant dense<0.000000e+00> : vector<16x256xf32>
    %112 = tpu.matmul %109, %111, %cst_39 {dimension_numbers = #tpu.dot_dimension_numbers<[1], [0], [0], [1], [0, 0, 1, 1], [], []>} : vector<16x256xbf16>, vector<256x256xbf16>, vector<16x256xf32> -> vector<16x256xf32>
    %c3 = arith.constant 3 : index
    %c0_40 = arith.constant 0 : index
    %113 = vector.load %arg5[%c3, %c0_40] : memref<18x256xf32, #tpu.memory_space<vmem>>, vector<1x256xf32>
    %114 = vector.broadcast %113 : vector<1x256xf32> to vector<16x256xf32>
    %115 = arith.addf %112, %114 : vector<16x256xf32>
    %c4 = arith.constant 4 : index
    %c0_41 = arith.constant 0 : index
    %116 = vector.load %arg5[%c4, %c0_41] : memref<18x256xf32, #tpu.memory_space<vmem>>, vector<1x256xf32>
    %c5 = arith.constant 5 : index
    %c0_42 = arith.constant 0 : index
    %117 = vector.load %arg5[%c5, %c0_42] : memref<18x256xf32, #tpu.memory_space<vmem>>, vector<1x256xf32>
    %118 = vector.extract_strided_slice %115 {offsets = [0, 0], sizes = [8, 256], strides = [1, 1]} : vector<16x256xf32> to vector<8x256xf32>
    %cst_43 = arith.constant dense<0.000000e+00> : vector<256xf32>
    %119 = vector.multi_reduction <add>, %118, %cst_43 [0] : vector<8x256xf32> to vector<256xf32>
    %120 = vector.shape_cast %119 : vector<256xf32> to vector<1x256xf32>
    %cst_44 = arith.constant 8.000000e+00 : f32
    %121 = vector.broadcast %cst_44 : f32 to vector<1x256xf32>
    %122 = arith.divf %120, %121 : vector<1x256xf32>
    %123 = vector.broadcast %122 : vector<1x256xf32> to vector<8x256xf32>
    %124 = arith.subf %118, %123 : vector<8x256xf32>
    %125 = arith.mulf %124, %124 : vector<8x256xf32>
    %cst_45 = arith.constant dense<0.000000e+00> : vector<256xf32>
    %126 = vector.multi_reduction <add>, %125, %cst_45 [0] : vector<8x256xf32> to vector<256xf32>
    %127 = vector.shape_cast %126 : vector<256xf32> to vector<1x256xf32>
    %cst_46 = arith.constant 8.000000e+00 : f32
    %128 = vector.broadcast %cst_46 : f32 to vector<1x256xf32>
    %129 = arith.divf %127, %128 : vector<1x256xf32>
    %cst_47 = arith.constant 9.99999974E-6 : f32
    %130 = vector.broadcast %cst_47 : f32 to vector<1x256xf32>
    %131 = arith.addf %129, %130 : vector<1x256xf32>
    %132 = math.rsqrt %131 : vector<1x256xf32>
    %133 = vector.broadcast %132 : vector<1x256xf32> to vector<8x256xf32>
    %134 = arith.mulf %124, %133 : vector<8x256xf32>
    %135 = vector.extract_strided_slice %115 {offsets = [8, 0], sizes = [8, 256], strides = [1, 1]} : vector<16x256xf32> to vector<8x256xf32>
    %cst_48 = arith.constant dense<0.000000e+00> : vector<256xf32>
    %136 = vector.multi_reduction <add>, %135, %cst_48 [0] : vector<8x256xf32> to vector<256xf32>
    %137 = vector.shape_cast %136 : vector<256xf32> to vector<1x256xf32>
    %cst_49 = arith.constant 8.000000e+00 : f32
    %138 = vector.broadcast %cst_49 : f32 to vector<1x256xf32>
    %139 = arith.divf %137, %138 : vector<1x256xf32>
    %140 = vector.broadcast %139 : vector<1x256xf32> to vector<8x256xf32>
    %141 = arith.subf %135, %140 : vector<8x256xf32>
    %142 = arith.mulf %141, %141 : vector<8x256xf32>
    %cst_50 = arith.constant dense<0.000000e+00> : vector<256xf32>
    %143 = vector.multi_reduction <add>, %142, %cst_50 [0] : vector<8x256xf32> to vector<256xf32>
    %144 = vector.shape_cast %143 : vector<256xf32> to vector<1x256xf32>
    %cst_51 = arith.constant 8.000000e+00 : f32
    %145 = vector.broadcast %cst_51 : f32 to vector<1x256xf32>
    %146 = arith.divf %144, %145 : vector<1x256xf32>
    %cst_52 = arith.constant 9.99999974E-6 : f32
    %147 = vector.broadcast %cst_52 : f32 to vector<1x256xf32>
    %148 = arith.addf %146, %147 : vector<1x256xf32>
    %149 = math.rsqrt %148 : vector<1x256xf32>
    %150 = vector.broadcast %149 : vector<1x256xf32> to vector<8x256xf32>
    %151 = arith.mulf %141, %150 : vector<8x256xf32>
    %152 = tpu.concatenate %134, %151 in 0 : vector<8x256xf32>, vector<8x256xf32> -> vector<16x256xf32>
    %153 = vector.broadcast %116 : vector<1x256xf32> to vector<16x256xf32>
    %154 = arith.mulf %152, %153 : vector<16x256xf32>
    %155 = vector.broadcast %117 : vector<1x256xf32> to vector<16x256xf32>
    %156 = arith.addf %154, %155 : vector<16x256xf32>
    %cst_53 = arith.constant 5.000000e-01 : f32
    %157 = vector.broadcast %cst_53 : f32 to vector<16x256xf32>
    %158 = arith.mulf %157, %156 : vector<16x256xf32>
    %cst_54 = arith.constant 4.471500e-02 : f32
    %159 = vector.broadcast %cst_54 : f32 to vector<16x256xf32>
    %160 = arith.mulf %159, %156 : vector<16x256xf32>
    %161 = arith.mulf %160, %156 : vector<16x256xf32>
    %162 = arith.mulf %161, %156 : vector<16x256xf32>
    %163 = arith.addf %156, %162 : vector<16x256xf32>
    %cst_55 = arith.constant 0.797884583 : f32
    %164 = vector.broadcast %cst_55 : f32 to vector<16x256xf32>
    %165 = arith.mulf %164, %163 : vector<16x256xf32>
    %166 = math.tanh %165 : vector<16x256xf32>
    %cst_56 = arith.constant 1.000000e+00 : f32
    %167 = vector.broadcast %cst_56 : f32 to vector<16x256xf32>
    %168 = arith.addf %167, %166 : vector<16x256xf32>
    %169 = arith.mulf %158, %168 : vector<16x256xf32>
    %c0_57 = arith.constant 0 : index
    %c0_58 = arith.constant 0 : index
    %170 = vector.load %arg4[%c0_57, %c0_58] : memref<256x256xf32, #tpu.memory_space<vmem>>, vector<256x256xf32>
    %cst_59 = arith.constant dense<0.000000e+00> : vector<16x256xf32>
    %171 = tpu.matmul %169, %170, %cst_59 {dimension_numbers = #tpu.dot_dimension_numbers<[1], [0], [0], [1], [0, 0, 1, 1], [], []>} : vector<16x256xf32>, vector<256x256xf32>, vector<16x256xf32> -> vector<16x256xf32>
    %c6 = arith.constant 6 : index
    %c0_60 = arith.constant 0 : index
    %172 = vector.load %arg5[%c6, %c0_60] : memref<18x256xf32, #tpu.memory_space<vmem>>, vector<1x256xf32>
    %173 = vector.broadcast %172 : vector<1x256xf32> to vector<16x256xf32>
    %174 = arith.addf %171, %173 : vector<16x256xf32>
    %c7 = arith.constant 7 : index
    %c0_61 = arith.constant 0 : index
    %175 = vector.load %arg5[%c7, %c0_61] : memref<18x256xf32, #tpu.memory_space<vmem>>, vector<1x256xf32>
    %c8 = arith.constant 8 : index
    %c0_62 = arith.constant 0 : index
    %176 = vector.load %arg5[%c8, %c0_62] : memref<18x256xf32, #tpu.memory_space<vmem>>, vector<1x256xf32>
    %177 = vector.extract_strided_slice %174 {offsets = [0, 0], sizes = [8, 256], strides = [1, 1]} : vector<16x256xf32> to vector<8x256xf32>
    %cst_63 = arith.constant dense<0.000000e+00> : vector<256xf32>
    %178 = vector.multi_reduction <add>, %177, %cst_63 [0] : vector<8x256xf32> to vector<256xf32>
    %179 = vector.shape_cast %178 : vector<256xf32> to vector<1x256xf32>
    %cst_64 = arith.constant 8.000000e+00 : f32
    %180 = vector.broadcast %cst_64 : f32 to vector<1x256xf32>
    %181 = arith.divf %179, %180 : vector<1x256xf32>
    %182 = vector.broadcast %181 : vector<1x256xf32> to vector<8x256xf32>
    %183 = arith.subf %177, %182 : vector<8x256xf32>
    %184 = arith.mulf %183, %183 : vector<8x256xf32>
    %cst_65 = arith.constant dense<0.000000e+00> : vector<256xf32>
    %185 = vector.multi_reduction <add>, %184, %cst_65 [0] : vector<8x256xf32> to vector<256xf32>
    %186 = vector.shape_cast %185 : vector<256xf32> to vector<1x256xf32>
    %cst_66 = arith.constant 8.000000e+00 : f32
    %187 = vector.broadcast %cst_66 : f32 to vector<1x256xf32>
    %188 = arith.divf %186, %187 : vector<1x256xf32>
    %cst_67 = arith.constant 9.99999974E-6 : f32
    %189 = vector.broadcast %cst_67 : f32 to vector<1x256xf32>
    %190 = arith.addf %188, %189 : vector<1x256xf32>
    %191 = math.rsqrt %190 : vector<1x256xf32>
    %192 = vector.broadcast %191 : vector<1x256xf32> to vector<8x256xf32>
    %193 = arith.mulf %183, %192 : vector<8x256xf32>
    %194 = vector.extract_strided_slice %174 {offsets = [8, 0], sizes = [8, 256], strides = [1, 1]} : vector<16x256xf32> to vector<8x256xf32>
    %cst_68 = arith.constant dense<0.000000e+00> : vector<256xf32>
    %195 = vector.multi_reduction <add>, %194, %cst_68 [0] : vector<8x256xf32> to vector<256xf32>
    %196 = vector.shape_cast %195 : vector<256xf32> to vector<1x256xf32>
    %cst_69 = arith.constant 8.000000e+00 : f32
    %197 = vector.broadcast %cst_69 : f32 to vector<1x256xf32>
    %198 = arith.divf %196, %197 : vector<1x256xf32>
    %199 = vector.broadcast %198 : vector<1x256xf32> to vector<8x256xf32>
    %200 = arith.subf %194, %199 : vector<8x256xf32>
    %201 = arith.mulf %200, %200 : vector<8x256xf32>
    %cst_70 = arith.constant dense<0.000000e+00> : vector<256xf32>
    %202 = vector.multi_reduction <add>, %201, %cst_70 [0] : vector<8x256xf32> to vector<256xf32>
    %203 = vector.shape_cast %202 : vector<256xf32> to vector<1x256xf32>
    %cst_71 = arith.constant 8.000000e+00 : f32
    %204 = vector.broadcast %cst_71 : f32 to vector<1x256xf32>
    %205 = arith.divf %203, %204 : vector<1x256xf32>
    %cst_72 = arith.constant 9.99999974E-6 : f32
    %206 = vector.broadcast %cst_72 : f32 to vector<1x256xf32>
    %207 = arith.addf %205, %206 : vector<1x256xf32>
    %208 = math.rsqrt %207 : vector<1x256xf32>
    %209 = vector.broadcast %208 : vector<1x256xf32> to vector<8x256xf32>
    %210 = arith.mulf %200, %209 : vector<8x256xf32>
    %211 = tpu.concatenate %193, %210 in 0 : vector<8x256xf32>, vector<8x256xf32> -> vector<16x256xf32>
    %212 = vector.broadcast %175 : vector<1x256xf32> to vector<16x256xf32>
    %213 = arith.mulf %211, %212 : vector<16x256xf32>
    %214 = vector.broadcast %176 : vector<1x256xf32> to vector<16x256xf32>
    %215 = arith.addf %213, %214 : vector<16x256xf32>
    %cst_73 = arith.constant 5.000000e-01 : f32
    %216 = vector.broadcast %cst_73 : f32 to vector<16x256xf32>
    %217 = arith.mulf %216, %215 : vector<16x256xf32>
    %cst_74 = arith.constant 4.471500e-02 : f32
    %218 = vector.broadcast %cst_74 : f32 to vector<16x256xf32>
    %219 = arith.mulf %218, %215 : vector<16x256xf32>
    %220 = arith.mulf %219, %215 : vector<16x256xf32>
    %221 = arith.mulf %220, %215 : vector<16x256xf32>
    %222 = arith.addf %215, %221 : vector<16x256xf32>
    %cst_75 = arith.constant 0.797884583 : f32
    %223 = vector.broadcast %cst_75 : f32 to vector<16x256xf32>
    %224 = arith.mulf %223, %222 : vector<16x256xf32>
    %225 = math.tanh %224 : vector<16x256xf32>
    %cst_76 = arith.constant 1.000000e+00 : f32
    %226 = vector.broadcast %cst_76 : f32 to vector<16x256xf32>
    %227 = arith.addf %226, %225 : vector<16x256xf32>
    %228 = arith.mulf %217, %227 : vector<16x256xf32>
    %229 = arith.truncf %108 : vector<16x256xf32> to vector<16x256xbf16>
    %c1_77 = arith.constant 1 : index
    %c0_78 = arith.constant 0 : index
    %c0_79 = arith.constant 0 : index
    %230 = vector.load %arg3[%c1_77, %c0_78, %c0_79] : memref<3x256x256xbf16, #tpu.memory_space<vmem>>, vector<1x256x256xbf16>
    %231 = vector.shape_cast %230 : vector<1x256x256xbf16> to vector<256x256xbf16>
    %cst_80 = arith.constant dense<0.000000e+00> : vector<16x256xf32>
    %232 = tpu.matmul %229, %231, %cst_80 {dimension_numbers = #tpu.dot_dimension_numbers<[1], [0], [0], [1], [0, 0, 1, 1], [], []>} : vector<16x256xbf16>, vector<256x256xbf16>, vector<16x256xf32> -> vector<16x256xf32>
    %c12 = arith.constant 12 : index
    %c0_81 = arith.constant 0 : index
    %233 = vector.load %arg5[%c12, %c0_81] : memref<18x256xf32, #tpu.memory_space<vmem>>, vector<1x256xf32>
    %234 = vector.broadcast %233 : vector<1x256xf32> to vector<16x256xf32>
    %235 = arith.addf %232, %234 : vector<16x256xf32>
    %c13 = arith.constant 13 : index
    %c0_82 = arith.constant 0 : index
    %236 = vector.load %arg5[%c13, %c0_82] : memref<18x256xf32, #tpu.memory_space<vmem>>, vector<1x256xf32>
    %c14 = arith.constant 14 : index
    %c0_83 = arith.constant 0 : index
    %237 = vector.load %arg5[%c14, %c0_83] : memref<18x256xf32, #tpu.memory_space<vmem>>, vector<1x256xf32>
    %238 = vector.extract_strided_slice %235 {offsets = [0, 0], sizes = [8, 256], strides = [1, 1]} : vector<16x256xf32> to vector<8x256xf32>
    %cst_84 = arith.constant dense<0.000000e+00> : vector<256xf32>
    %239 = vector.multi_reduction <add>, %238, %cst_84 [0] : vector<8x256xf32> to vector<256xf32>
    %240 = vector.shape_cast %239 : vector<256xf32> to vector<1x256xf32>
    %cst_85 = arith.constant 8.000000e+00 : f32
    %241 = vector.broadcast %cst_85 : f32 to vector<1x256xf32>
    %242 = arith.divf %240, %241 : vector<1x256xf32>
    %243 = vector.broadcast %242 : vector<1x256xf32> to vector<8x256xf32>
    %244 = arith.subf %238, %243 : vector<8x256xf32>
    %245 = arith.mulf %244, %244 : vector<8x256xf32>
    %cst_86 = arith.constant dense<0.000000e+00> : vector<256xf32>
    %246 = vector.multi_reduction <add>, %245, %cst_86 [0] : vector<8x256xf32> to vector<256xf32>
    %247 = vector.shape_cast %246 : vector<256xf32> to vector<1x256xf32>
    %cst_87 = arith.constant 8.000000e+00 : f32
    %248 = vector.broadcast %cst_87 : f32 to vector<1x256xf32>
    %249 = arith.divf %247, %248 : vector<1x256xf32>
    %cst_88 = arith.constant 9.99999974E-6 : f32
    %250 = vector.broadcast %cst_88 : f32 to vector<1x256xf32>
    %251 = arith.addf %249, %250 : vector<1x256xf32>
    %252 = math.rsqrt %251 : vector<1x256xf32>
    %253 = vector.broadcast %252 : vector<1x256xf32> to vector<8x256xf32>
    %254 = arith.mulf %244, %253 : vector<8x256xf32>
    %255 = vector.extract_strided_slice %235 {offsets = [8, 0], sizes = [8, 256], strides = [1, 1]} : vector<16x256xf32> to vector<8x256xf32>
    %cst_89 = arith.constant dense<0.000000e+00> : vector<256xf32>
    %256 = vector.multi_reduction <add>, %255, %cst_89 [0] : vector<8x256xf32> to vector<256xf32>
    %257 = vector.shape_cast %256 : vector<256xf32> to vector<1x256xf32>
    %cst_90 = arith.constant 8.000000e+00 : f32
    %258 = vector.broadcast %cst_90 : f32 to vector<1x256xf32>
    %259 = arith.divf %257, %258 : vector<1x256xf32>
    %260 = vector.broadcast %259 : vector<1x256xf32> to vector<8x256xf32>
    %261 = arith.subf %255, %260 : vector<8x256xf32>
    %262 = arith.mulf %261, %261 : vector<8x256xf32>
    %cst_91 = arith.constant dense<0.000000e+00> : vector<256xf32>
    %263 = vector.multi_reduction <add>, %262, %cst_91 [0] : vector<8x256xf32> to vector<256xf32>
    %264 = vector.shape_cast %263 : vector<256xf32> to vector<1x256xf32>
    %cst_92 = arith.constant 8.000000e+00 : f32
    %265 = vector.broadcast %cst_92 : f32 to vector<1x256xf32>
    %266 = arith.divf %264, %265 : vector<1x256xf32>
    %cst_93 = arith.constant 9.99999974E-6 : f32
    %267 = vector.broadcast %cst_93 : f32 to vector<1x256xf32>
    %268 = arith.addf %266, %267 : vector<1x256xf32>
    %269 = math.rsqrt %268 : vector<1x256xf32>
    %270 = vector.broadcast %269 : vector<1x256xf32> to vector<8x256xf32>
    %271 = arith.mulf %261, %270 : vector<8x256xf32>
    %272 = tpu.concatenate %254, %271 in 0 : vector<8x256xf32>, vector<8x256xf32> -> vector<16x256xf32>
    %273 = vector.broadcast %236 : vector<1x256xf32> to vector<16x256xf32>
    %274 = arith.mulf %272, %273 : vector<16x256xf32>
    %275 = vector.broadcast %237 : vector<1x256xf32> to vector<16x256xf32>
    %276 = arith.addf %274, %275 : vector<16x256xf32>
    %277 = arith.truncf %276 : vector<16x256xf32> to vector<16x256xbf16>
    %c2_94 = arith.constant 2 : index
    %c0_95 = arith.constant 0 : index
    %c0_96 = arith.constant 0 : index
    %278 = vector.load %arg3[%c2_94, %c0_95, %c0_96] : memref<3x256x256xbf16, #tpu.memory_space<vmem>>, vector<1x256x256xbf16>
    %279 = vector.shape_cast %278 : vector<1x256x256xbf16> to vector<256x256xbf16>
    %cst_97 = arith.constant dense<0.000000e+00> : vector<16x256xf32>
    %280 = tpu.matmul %277, %279, %cst_97 {dimension_numbers = #tpu.dot_dimension_numbers<[1], [0], [0], [1], [0, 0, 1, 1], [], []>} : vector<16x256xbf16>, vector<256x256xbf16>, vector<16x256xf32> -> vector<16x256xf32>
    %c15 = arith.constant 15 : index
    %c0_98 = arith.constant 0 : index
    %281 = vector.load %arg5[%c15, %c0_98] : memref<18x256xf32, #tpu.memory_space<vmem>>, vector<1x256xf32>
    %282 = vector.broadcast %281 : vector<1x256xf32> to vector<16x256xf32>
    %283 = arith.addf %280, %282 : vector<16x256xf32>
    %c16 = arith.constant 16 : index
    %c0_99 = arith.constant 0 : index
    %284 = vector.load %arg5[%c16, %c0_99] : memref<18x256xf32, #tpu.memory_space<vmem>>, vector<1x256xf32>
    %c17 = arith.constant 17 : index
    %c0_100 = arith.constant 0 : index
    %285 = vector.load %arg5[%c17, %c0_100] : memref<18x256xf32, #tpu.memory_space<vmem>>, vector<1x256xf32>
    %286 = vector.extract_strided_slice %283 {offsets = [0, 0], sizes = [8, 256], strides = [1, 1]} : vector<16x256xf32> to vector<8x256xf32>
    %cst_101 = arith.constant dense<0.000000e+00> : vector<256xf32>
    %287 = vector.multi_reduction <add>, %286, %cst_101 [0] : vector<8x256xf32> to vector<256xf32>
    %288 = vector.shape_cast %287 : vector<256xf32> to vector<1x256xf32>
    %cst_102 = arith.constant 8.000000e+00 : f32
    %289 = vector.broadcast %cst_102 : f32 to vector<1x256xf32>
    %290 = arith.divf %288, %289 : vector<1x256xf32>
    %291 = vector.broadcast %290 : vector<1x256xf32> to vector<8x256xf32>
    %292 = arith.subf %286, %291 : vector<8x256xf32>
    %293 = arith.mulf %292, %292 : vector<8x256xf32>
    %cst_103 = arith.constant dense<0.000000e+00> : vector<256xf32>
    %294 = vector.multi_reduction <add>, %293, %cst_103 [0] : vector<8x256xf32> to vector<256xf32>
    %295 = vector.shape_cast %294 : vector<256xf32> to vector<1x256xf32>
    %cst_104 = arith.constant 8.000000e+00 : f32
    %296 = vector.broadcast %cst_104 : f32 to vector<1x256xf32>
    %297 = arith.divf %295, %296 : vector<1x256xf32>
    %cst_105 = arith.constant 9.99999974E-6 : f32
    %298 = vector.broadcast %cst_105 : f32 to vector<1x256xf32>
    %299 = arith.addf %297, %298 : vector<1x256xf32>
    %300 = math.rsqrt %299 : vector<1x256xf32>
    %301 = vector.broadcast %300 : vector<1x256xf32> to vector<8x256xf32>
    %302 = arith.mulf %292, %301 : vector<8x256xf32>
    %303 = vector.extract_strided_slice %283 {offsets = [8, 0], sizes = [8, 256], strides = [1, 1]} : vector<16x256xf32> to vector<8x256xf32>
    %cst_106 = arith.constant dense<0.000000e+00> : vector<256xf32>
    %304 = vector.multi_reduction <add>, %303, %cst_106 [0] : vector<8x256xf32> to vector<256xf32>
    %305 = vector.shape_cast %304 : vector<256xf32> to vector<1x256xf32>
    %cst_107 = arith.constant 8.000000e+00 : f32
    %306 = vector.broadcast %cst_107 : f32 to vector<1x256xf32>
    %307 = arith.divf %305, %306 : vector<1x256xf32>
    %308 = vector.broadcast %307 : vector<1x256xf32> to vector<8x256xf32>
    %309 = arith.subf %303, %308 : vector<8x256xf32>
    %310 = arith.mulf %309, %309 : vector<8x256xf32>
    %cst_108 = arith.constant dense<0.000000e+00> : vector<256xf32>
    %311 = vector.multi_reduction <add>, %310, %cst_108 [0] : vector<8x256xf32> to vector<256xf32>
    %312 = vector.shape_cast %311 : vector<256xf32> to vector<1x256xf32>
    %cst_109 = arith.constant 8.000000e+00 : f32
    %313 = vector.broadcast %cst_109 : f32 to vector<1x256xf32>
    %314 = arith.divf %312, %313 : vector<1x256xf32>
    %cst_110 = arith.constant 9.99999974E-6 : f32
    %315 = vector.broadcast %cst_110 : f32 to vector<1x256xf32>
    %316 = arith.addf %314, %315 : vector<1x256xf32>
    %317 = math.rsqrt %316 : vector<1x256xf32>
    %318 = vector.broadcast %317 : vector<1x256xf32> to vector<8x256xf32>
    %319 = arith.mulf %309, %318 : vector<8x256xf32>
    %320 = tpu.concatenate %302, %319 in 0 : vector<8x256xf32>, vector<8x256xf32> -> vector<16x256xf32>
    %321 = vector.broadcast %284 : vector<1x256xf32> to vector<16x256xf32>
    %322 = arith.mulf %320, %321 : vector<16x256xf32>
    %323 = vector.broadcast %285 : vector<1x256xf32> to vector<16x256xf32>
    %324 = arith.addf %322, %323 : vector<16x256xf32>
    %cst_111 = arith.constant 1.000000e+04 : f32
    %325 = vector.broadcast %cst_111 : f32 to vector<16x256xf32>
    %326 = arith.mulf %228, %325 : vector<16x256xf32>
    %cst_112 = arith.constant dense<0xFF800000> : vector<16xf32>
    %327 = vector.multi_reduction <maximumf>, %326, %cst_112 [1] : vector<16x256xf32> to vector<16xf32>
    %328 = vector.shape_cast %327 : vector<16xf32> to vector<16x1xf32>
    %329 = vector.broadcast %328 : vector<16x1xf32> to vector<16x256xf32>
    %330 = arith.subf %326, %329 : vector<16x256xf32>
    %331 = math.exp %330 : vector<16x256xf32>
    %cst_113 = arith.constant dense<0.000000e+00> : vector<16xf32>
    %332 = vector.multi_reduction <add>, %331, %cst_113 [1] : vector<16x256xf32> to vector<16xf32>
    %333 = vector.shape_cast %332 : vector<16xf32> to vector<16x1xf32>
    %334 = tpu.reciprocal %333 {approx = true} : vector<16x1xf32> -> vector<16x1xf32>
    %335 = vector.broadcast %334 : vector<16x1xf32> to vector<16x256xf32>
    %336 = arith.mulf %331, %335 : vector<16x256xf32>
    %337 = vector.broadcast %328 : vector<16x1xf32> to vector<16x256xf32>
    %338 = arith.subf %326, %337 : vector<16x256xf32>
    %339 = math.log %333 : vector<16x1xf32>
    %340 = vector.broadcast %339 : vector<16x1xf32> to vector<16x256xf32>
    %341 = arith.subf %338, %340 : vector<16x256xf32>
    %cst_114 = arith.constant dense<0xFF800000> : vector<16xf32>
    %342 = vector.multi_reduction <maximumf>, %324, %cst_114 [1] : vector<16x256xf32> to vector<16xf32>
    %343 = vector.shape_cast %342 : vector<16xf32> to vector<16x1xf32>
    %344 = vector.broadcast %343 : vector<16x1xf32> to vector<16x256xf32>
    %345 = arith.subf %324, %344 : vector<16x256xf32>
    %346 = math.exp %345 : vector<16x256xf32>
    %347 = vector.broadcast %343 : vector<16x1xf32> to vector<16x256xf32>
    %348 = arith.subf %324, %347 : vector<16x256xf32>
    %cst_115 = arith.constant dense<0.000000e+00> : vector<16xf32>
    %349 = vector.multi_reduction <add>, %346, %cst_115 [1] : vector<16x256xf32> to vector<16xf32>
    %350 = vector.shape_cast %349 : vector<16xf32> to vector<16x1xf32>
    %351 = math.log %350 : vector<16x1xf32>
    %352 = vector.broadcast %351 : vector<16x1xf32> to vector<16x256xf32>
    %353 = arith.subf %348, %352 : vector<16x256xf32>
    %354 = vector.extract_strided_slice %336 {offsets = [0, 0], sizes = [8, 256], strides = [1, 1]} : vector<16x256xf32> to vector<8x256xf32>
    %355 = vector.extract_strided_slice %336 {offsets = [8, 0], sizes = [8, 256], strides = [1, 1]} : vector<16x256xf32> to vector<8x256xf32>
    %356 = vector.extract_strided_slice %341 {offsets = [0, 0], sizes = [8, 256], strides = [1, 1]} : vector<16x256xf32> to vector<8x256xf32>
    %357 = vector.extract_strided_slice %341 {offsets = [8, 0], sizes = [8, 256], strides = [1, 1]} : vector<16x256xf32> to vector<8x256xf32>
    %358 = vector.extract_strided_slice %353 {offsets = [0, 0], sizes = [8, 256], strides = [1, 1]} : vector<16x256xf32> to vector<8x256xf32>
    %359 = vector.extract_strided_slice %353 {offsets = [8, 0], sizes = [8, 256], strides = [1, 1]} : vector<16x256xf32> to vector<8x256xf32>
    %cst_116 = arith.constant dense<0.000000e+00> : vector<256xf32>
    %360 = vector.multi_reduction <add>, %354, %cst_116 [0] : vector<8x256xf32> to vector<256xf32>
    %361 = vector.shape_cast %360 : vector<256xf32> to vector<1x256xf32>
    %cst_117 = arith.constant 8.000000e+00 : f32
    %362 = vector.broadcast %cst_117 : f32 to vector<1x256xf32>
    %363 = arith.divf %361, %362 : vector<1x256xf32>
    %cst_118 = arith.constant 1.17549435E-38 : f32
    %364 = vector.broadcast %cst_118 : f32 to vector<1x256xf32>
    %365 = arith.maximumf %363, %364 : vector<1x256xf32>
    %366 = math.log %365 : vector<1x256xf32>
    %367 = arith.mulf %363, %366 : vector<1x256xf32>
    %368 = vector.shape_cast %367 : vector<1x256xf32> to vector<1x1x256xf32>
    %cst_119 = arith.constant dense<0.000000e+00> : vector<1xf32>
    %369 = vector.multi_reduction <add>, %368, %cst_119 [1, 2] : vector<1x1x256xf32> to vector<1xf32>
    %370 = vector.shape_cast %369 : vector<1xf32> to vector<1x1x1xf32>
    %371 = vector.extract %370[0, 0, 0] : f32 from vector<1x1x1xf32>
    %372 = arith.mulf %354, %357 : vector<8x256xf32>
    %cst_120 = arith.constant dense<0.000000e+00> : vector<8xf32>
    %373 = vector.multi_reduction <add>, %372, %cst_120 [1] : vector<8x256xf32> to vector<8xf32>
    %374 = vector.shape_cast %373 : vector<8xf32> to vector<8x1xf32>
    %375 = vector.shape_cast %374 : vector<8x1xf32> to vector<1x8x1xf32>
    %cst_121 = arith.constant dense<0.000000e+00> : vector<1xf32>
    %376 = vector.multi_reduction <add>, %375, %cst_121 [1, 2] : vector<1x8x1xf32> to vector<1xf32>
    %377 = vector.shape_cast %376 : vector<1xf32> to vector<1x1x1xf32>
    %378 = vector.extract %377[0, 0, 0] : f32 from vector<1x1x1xf32>
    %cst_122 = arith.constant 8.000000e+00 : f32
    %379 = arith.divf %378, %cst_122 : f32
    %380 = arith.mulf %354, %359 : vector<8x256xf32>
    %cst_123 = arith.constant dense<0.000000e+00> : vector<8xf32>
    %381 = vector.multi_reduction <add>, %380, %cst_123 [1] : vector<8x256xf32> to vector<8xf32>
    %382 = vector.shape_cast %381 : vector<8xf32> to vector<8x1xf32>
    %383 = vector.shape_cast %382 : vector<8x1xf32> to vector<1x8x1xf32>
    %cst_124 = arith.constant dense<0.000000e+00> : vector<1xf32>
    %384 = vector.multi_reduction <add>, %383, %cst_124 [1, 2] : vector<1x8x1xf32> to vector<1xf32>
    %385 = vector.shape_cast %384 : vector<1xf32> to vector<1x1x1xf32>
    %386 = vector.extract %385[0, 0, 0] : f32 from vector<1x1x1xf32>
    %cst_125 = arith.constant 8.000000e+00 : f32
    %387 = arith.divf %386, %cst_125 : f32
    %cst_126 = arith.constant 2.300000e+00 : f32
    %388 = arith.mulf %cst_126, %371 : f32
    %cst_127 = arith.constant 8.000000e-01 : f32
    %389 = arith.mulf %cst_127, %379 : f32
    %390 = arith.subf %388, %389 : f32
    %391 = arith.subf %390, %387 : f32
    %cst_128 = arith.constant dense<0.000000e+00> : vector<256xf32>
    %392 = vector.multi_reduction <add>, %355, %cst_128 [0] : vector<8x256xf32> to vector<256xf32>
    %393 = vector.shape_cast %392 : vector<256xf32> to vector<1x256xf32>
    %cst_129 = arith.constant 8.000000e+00 : f32
    %394 = vector.broadcast %cst_129 : f32 to vector<1x256xf32>
    %395 = arith.divf %393, %394 : vector<1x256xf32>
    %cst_130 = arith.constant 1.17549435E-38 : f32
    %396 = vector.broadcast %cst_130 : f32 to vector<1x256xf32>
    %397 = arith.maximumf %395, %396 : vector<1x256xf32>
    %398 = math.log %397 : vector<1x256xf32>
    %399 = arith.mulf %395, %398 : vector<1x256xf32>
    %400 = vector.shape_cast %399 : vector<1x256xf32> to vector<1x1x256xf32>
    %cst_131 = arith.constant dense<0.000000e+00> : vector<1xf32>
    %401 = vector.multi_reduction <add>, %400, %cst_131 [1, 2] : vector<1x1x256xf32> to vector<1xf32>
    %402 = vector.shape_cast %401 : vector<1xf32> to vector<1x1x1xf32>
    %403 = vector.extract %402[0, 0, 0] : f32 from vector<1x1x1xf32>
    %404 = arith.mulf %355, %356 : vector<8x256xf32>
    %cst_132 = arith.constant dense<0.000000e+00> : vector<8xf32>
    %405 = vector.multi_reduction <add>, %404, %cst_132 [1] : vector<8x256xf32> to vector<8xf32>
    %406 = vector.shape_cast %405 : vector<8xf32> to vector<8x1xf32>
    %407 = vector.shape_cast %406 : vector<8x1xf32> to vector<1x8x1xf32>
    %cst_133 = arith.constant dense<0.000000e+00> : vector<1xf32>
    %408 = vector.multi_reduction <add>, %407, %cst_133 [1, 2] : vector<1x8x1xf32> to vector<1xf32>
    %409 = vector.shape_cast %408 : vector<1xf32> to vector<1x1x1xf32>
    %410 = vector.extract %409[0, 0, 0] : f32 from vector<1x1x1xf32>
    %cst_134 = arith.constant 8.000000e+00 : f32
    %411 = arith.divf %410, %cst_134 : f32
    %412 = arith.mulf %355, %358 : vector<8x256xf32>
    %cst_135 = arith.constant dense<0.000000e+00> : vector<8xf32>
    %413 = vector.multi_reduction <add>, %412, %cst_135 [1] : vector<8x256xf32> to vector<8xf32>
    %414 = vector.shape_cast %413 : vector<8xf32> to vector<8x1xf32>
    %415 = vector.shape_cast %414 : vector<8x1xf32> to vector<1x8x1xf32>
    %cst_136 = arith.constant dense<0.000000e+00> : vector<1xf32>
    %416 = vector.multi_reduction <add>, %415, %cst_136 [1, 2] : vector<1x8x1xf32> to vector<1xf32>
    %417 = vector.shape_cast %416 : vector<1xf32> to vector<1x1x1xf32>
    %418 = vector.extract %417[0, 0, 0] : f32 from vector<1x1x1xf32>
    %cst_137 = arith.constant 8.000000e+00 : f32
    %419 = arith.divf %418, %cst_137 : f32
    %cst_138 = arith.constant 2.300000e+00 : f32
    %420 = arith.mulf %cst_138, %403 : f32
    %cst_139 = arith.constant 8.000000e-01 : f32
    %421 = arith.mulf %cst_139, %411 : f32
    %422 = arith.subf %420, %421 : f32
    %423 = arith.subf %422, %419 : f32
    %424 = arith.addf %391, %423 : f32
    %cst_140 = arith.constant 5.000000e-01 : f32
    %425 = arith.mulf %424, %cst_140 : f32
    %c0_141 = arith.constant 0 : index
    %c0_142 = arith.constant 0 : index
    %426 = memref.load %arg6[%c0_141, %c0_142] : memref<1x1xf32, #tpu.memory_space<smem>>
    memref.store %425, %arg6[%c0_141, %c0_142] : memref<1x1xf32, #tpu.memory_space<smem>>
    return
  }
}

</mosaic_0001>

<llo_original>
// kernel: dissl_forward.1
$region0: #{dissl_forward.1}
  #allocation0 [shape = 'u32[]', space=smem, size = 0x4, offset = 0x4, fixed_abs, tag = 'smem constant byte address 0x4 - core index']
  #allocation1 [shape = 'u32[144,128]{1,0:T(1,128)}', space=vmem, size = 0x12000, scoped, tag = 'internal scratch']
  %s0 = inlined_call_operand.hbm [shape: f32[8,128], index: 0, kind: input, shape index: {}]
  %s1 = inlined_call_operand.vmem [shape: f32[8,128], index: 1, kind: input, shape index: {}]
  %s2 = inlined_call_operand.hbm [shape: bf16[128,512], index: 2, kind: input, shape index: {}]
  %s3 = inlined_call_operand.hbm [shape: bf16[3,256,256], index: 3, kind: input, shape index: {}]
  %s4 = inlined_call_operand.hbm [shape: f32[256,256], index: 4, kind: input, shape index: {}]
  %s5 = inlined_call_operand.hbm [shape: f32[18,256], index: 5, kind: input, shape index: {}]
  %s6 = inlined_call_operand.hbm [shape: f32[1,1], index: 6, kind: output, shape index: {}]
  %s7 = sld [smem:[#allocation0]]
  $region54: #{dissl_forward.1} parent=0
    _
  %s9 = ssub.s32 1, %s7
  %s10 = scalar_select 0, %s9, %s7
  $region1: #{dissl_forward.1} parent=0
    #allocation2 [shape = 'u8[4096]{0}', space=vmem, size = 0x1000, scoped, tag = 'input window, operand 0, single buffered']
    #allocation3 [shape = 's32[1]{0}', space=sflag, size = 0x4, scoped, tag = 'scoped memory for dissl_forward.1']
    #allocation4 [shape = 's32[1]{0}', space=sflag, size = 0x4, scoped, tag = 'scoped memory for dissl_forward.1']
    #allocation5 [shape = 'u8[131072]{0}', space=vmem, size = 0x20000, scoped, tag = 'input window, operand 2, single buffered']
    #allocation6 [shape = 's32[1]{0}', space=sflag, size = 0x4, scoped, tag = 'scoped memory for dissl_forward.1']
    #allocation7 [shape = 'u8[393216]{0}', space=vmem, size = 0x60000, scoped, tag = 'input window, operand 3, single buffered']
    #allocation8 [shape = 'u8[262144]{0}', space=vmem, size = 0x40000, scoped, tag = 'input window, operand 4, single buffered']
    #allocation9 [shape = 's32[1]{0}', space=sflag, size = 0x4, scoped, tag = 'scoped memory for dissl_forward.1']
    #allocation10 [shape = 'u8[24576]{0}', space=vmem, size = 0x6000, scoped, tag = 'input window, operand 5, single buffered']
    #allocation11 [shape = 'u8[512]{0}', space=smem, size = 0x200, scoped, tag = 'output window, operand 0, single buffered']
    %11 = vsyncpa [#allocation3], 0
    %12 = vsyncpa [#allocation6], 0
    %13 = vsyncpa [#allocation9], 0
    %14 = vsyncpa [#allocation4], 0
    // Predicated region
    $region2: #{dissl_forward.1} parent=1 // pred_check
      _
    $region3: #{dissl_forward.1} parent=1 // pred_check_branch
      %16 = sbr.rel (0) target = $region5
    $region4: #{dissl_forward.1} parent=1 // pred_region
      %s18 = ssub.s32 128, 128
      %19 = vsyncadd [#allocation3], %s18
      %s21 = sshll.u32 [#allocation2], 4
      %s22 = int_to_ptr.vmem [resolvable:$true] %s21
      %24 = dma.hbm_to_vmem [thread:$0]  %s0, 128, %s22, [#allocation3]
    $region5: #{dissl_forward.1} parent=1 // pred_fallthru
      _
    // Predicated region
    $region6: #{dissl_forward.1} parent=1 // pred_check
      _
    $region7: #{dissl_forward.1} parent=1 // pred_check_branch
      %26 = sbr.rel (0) target = $region9
    $region8: #{dissl_forward.1} parent=1 // pred_region
      _
    $region9: #{dissl_forward.1} parent=1 // pred_fallthru
      _
    // Predicated region
    $region10: #{dissl_forward.1} parent=1 // pred_check
      _
    $region11: #{dissl_forward.1} parent=1 // pred_check_branch
      %28 = sbr.rel (0) target = $region13
    $region12: #{dissl_forward.1} parent=1 // pred_region
      %s30 = ssub.s32 4096, 4096
      %31 = vsyncadd [#allocation6], %s30
      %s32 = sshll.u32 [#allocation5], 4
      %s33 = int_to_ptr.vmem [resolvable:$true] %s32
      %38 = dma.hbm_to_vmem [thread:$0]  %s2, 4096, %s33, [#allocation6], 256, 256, 16
    $region13: #{dissl_forward.1} parent=1 // pred_fallthru
      _
    // Predicated region
    $region14: #{dissl_forward.1} parent=1 // pred_check
      _
    $region15: #{dissl_forward.1} parent=1 // pred_check_branch
      %40 = sbr.rel (0) target = $region17
    $region16: #{dissl_forward.1} parent=1 // pred_region
      %s42 = ssub.s32 12288, 12288
      %43 = vsyncadd [#allocation6], %s42
      %s44 = sshll.u32 [#allocation7], 4
      %s45 = int_to_ptr.vmem [resolvable:$true] %s44
      %50 = dma.hbm_to_vmem [thread:$0]  %s3, 12288, %s45, [#allocation6], 128, 128, 8
    $region17: #{dissl_forward.1} parent=1 // pred_fallthru
      _
    // Predicated region
    $region18: #{dissl_forward.1} parent=1 // pred_check
      _
    $region19: #{dissl_forward.1} parent=1 // pred_check_branch
      %52 = sbr.rel (0) target = $region21
    $region20: #{dissl_forward.1} parent=1 // pred_region
      %s54 = ssub.s32 8192, 8192
      %55 = vsyncadd [#allocation9], %s54
      %s56 = sshll.u32 [#allocation8], 4
      %s57 = int_to_ptr.vmem [resolvable:$true] %s56
      %62 = dma.hbm_to_vmem [thread:$0]  %s4, 8192, %s57, [#allocation9], 256, 256, 16
    $region21: #{dissl_forward.1} parent=1 // pred_fallthru
      _
    // Predicated region
    $region22: #{dissl_forward.1} parent=1 // pred_check
      _
    $region23: #{dissl_forward.1} parent=1 // pred_check_branch
      %64 = sbr.rel (0) target = $region25
    $region24: #{dissl_forward.1} parent=1 // pred_region
      %s66 = ssub.s32 768, 768
      %67 = vsyncadd [#allocation9], %s66
      %s68 = sshll.u32 [#allocation10], 4
      %s69 = int_to_ptr.vmem [resolvable:$true] %s68
      %74 = dma.hbm_to_vmem [thread:$0]  %s5, 768, %s69, [#allocation9], 256, 256, 16
    $region25: #{dissl_forward.1} parent=1 // pred_fallthru
      _
    // Predicated region
    $region26: #{dissl_forward.1} parent=1 // pred_check
      _
    $region27: #{dissl_forward.1} parent=1 // pred_check_branch
      %76 = sbr.rel (0) target = $region29
    $region28: #{dissl_forward.1} parent=1 // pred_region
      %77 = dma.done [#allocation3], 128
    $region29: #{dissl_forward.1} parent=1 // pred_fallthru
      _
    // Predicated region
    $region30: #{dissl_forward.1} parent=1 // pred_check
      _
    $region31: #{dissl_forward.1} parent=1 // pred_check_branch
      %79 = sbr.rel (0) target = $region33
    $region32: #{dissl_forward.1} parent=1 // pred_region
      %80 = dma.done [#allocation6], 4096
    $region33: #{dissl_forward.1} parent=1 // pred_fallthru
      _
    // Predicated region
    $region34: #{dissl_forward.1} parent=1 // pred_check
      _
    $region35: #{dissl_forward.1} parent=1 // pred_check_branch
      %82 = sbr.rel (0) target = $region37
    $region36: #{dissl_forward.1} parent=1 // pred_region
      %83 = dma.done [#allocation6], 12288
    $region37: #{dissl_forward.1} parent=1 // pred_fallthru
      _
    // Predicated region
    $region38: #{dissl_forward.1} parent=1 // pred_check
      _
    $region39: #{dissl_forward.1} parent=1 // pred_check_branch
      %85 = sbr.rel (0) target = $region41
    $region40: #{dissl_forward.1} parent=1 // pred_region
      %86 = dma.done [#allocation9], 8192
    $region41: #{dissl_forward.1} parent=1 // pred_fallthru
      _
    // Predicated region
    $region42: #{dissl_forward.1} parent=1 // pred_check
      _
    $region43: #{dissl_forward.1} parent=1 // pred_check_branch
      %88 = sbr.rel (0) target = $region45
    $region44: #{dissl_forward.1} parent=1 // pred_region
      %89 = dma.done [#allocation9], 768
    $region45: #{dissl_forward.1} parent=1 // pred_fallthru
      _
    %v91 = vld [vmem:[#allocation2] sm:$0xff]
    %v92 = vld [vmem:[%s1] sm:$0xff]
    %v93 = vpack.c.bf16 %v92, %v91
    %v94 = vld [vmem:[#allocation5] sm:$0xff]
    %v95 = vld [vmem:[#allocation5 + $0x8] sm:$0xff]
    %v96 = vld [vmem:[#allocation5 + $0x10] sm:$0xff]
    %v97 = vld [vmem:[#allocation5 + $0x18] sm:$0xff]
    %v98 = vld [vmem:[#allocation5 + $0x20] sm:$0xff]
    %v99 = vld [vmem:[#allocation5 + $0x28] sm:$0xff]
    %v100 = vld [vmem:[#allocation5 + $0x30] sm:$0xff]
    %v101 = vld [vmem:[#allocation5 + $0x38] sm:$0xff]
    %v102 = vld [vmem:[#allocation5 + $0x40] sm:$0xff]
    %v103 = vld [vmem:[#allocation5 + $0x48] sm:$0xff]
    %v104 = vld [vmem:[#allocation5 + $0x50] sm:$0xff]
    %v105 = vld [vmem:[#allocation5 + $0x58] sm:$0xff]
    %v106 = vld [vmem:[#allocation5 + $0x60] sm:$0xff]
    %v107 = vld [vmem:[#allocation5 + $0x68] sm:$0xff]
    %v108 = vld [vmem:[#allocation5 + $0x70] sm:$0xff]
    %v109 = vld [vmem:[#allocation5 + $0x78] sm:$0xff]
    %v110 = vld [vmem:[#allocation5 + $0x80] sm:$0xff]
    %v111 = vld [vmem:[#allocation5 + $0x88] sm:$0xff]
    %v112 = vld [vmem:[#allocation5 + $0x90] sm:$0xff]
    %v113 = vld [vmem:[#allocation5 + $0x98] sm:$0xff]
    %v114 = vld [vmem:[#allocation5 + $0xa0] sm:$0xff]
    %v115 = vld [vmem:[#allocation5 + $0xa8] sm:$0xff]
    %v116 = vld [vmem:[#allocation5 + $0xb0] sm:$0xff]
    %v117 = vld [vmem:[#allocation5 + $0xb8] sm:$0xff]
    %v118 = vld [vmem:[#allocation5 + $0xc0] sm:$0xff]
    %v119 = vld [vmem:[#allocation5 + $0xc8] sm:$0xff]
    %v120 = vld [vmem:[#allocation5 + $0xd0] sm:$0xff]
    %v121 = vld [vmem:[#allocation5 + $0xd8] sm:$0xff]
    %v122 = vld [vmem:[#allocation5 + $0xe0] sm:$0xff]
    %v123 = vld [vmem:[#allocation5 + $0xe8] sm:$0xff]
    %v124 = vld [vmem:[#allocation5 + $0xf0] sm:$0xff]
    %v125 = vld [vmem:[#allocation5 + $0xf8] sm:$0xff]
    %v158 = vunpack.c.l.b16 %v94
    %v159 = vunpack.c.h.b16 %v94
    %v160 = vunpack.c.l.b16 %v95
    %v161 = vunpack.c.h.b16 %v95
    %v162 = vunpack.c.l.b16 %v96
    %v163 = vunpack.c.h.b16 %v96
    %v164 = vunpack.c.l.b16 %v97
    %v165 = vunpack.c.h.b16 %v97
    %v166 = vunpack.c.l.b16 %v98
    %v167 = vunpack.c.h.b16 %v98
    %v168 = vunpack.c.l.b16 %v99
    %v169 = vunpack.c.h.b16 %v99
    %v170 = vunpack.c.l.b16 %v100
    %v171 = vunpack.c.h.b16 %v100
    %v172 = vunpack.c.l.b16 %v101
    %v173 = vunpack.c.h.b16 %v101
    %v174 = vunpack.c.l.b16 %v102
    %v175 = vunpack.c.h.b16 %v102
    %v176 = vunpack.c.l.b16 %v103
    %v177 = vunpack.c.h.b16 %v103
    %v178 = vunpack.c.l.b16 %v104
    %v179 = vunpack.c.h.b16 %v104
    %v180 = vunpack.c.l.b16 %v105
    %v181 = vunpack.c.h.b16 %v105
    %v182 = vunpack.c.l.b16 %v106
    %v183 = vunpack.c.h.b16 %v106
    %v184 = vunpack.c.l.b16 %v107
    %v185 = vunpack.c.h.b16 %v107
    %v186 = vunpack.c.l.b16 %v108
    %v187 = vunpack.c.h.b16 %v108
    %v188 = vunpack.c.l.b16 %v109
    %v189 = vunpack.c.h.b16 %v109
    %v190 = vunpack.c.l.b16 %v110
    %v191 = vunpack.c.h.b16 %v110
    %v192 = vunpack.c.l.b16 %v111
    %v193 = vunpack.c.h.b16 %v111
    %v194 = vunpack.c.l.b16 %v112
    %v195 = vunpack.c.h.b16 %v112
    %v196 = vunpack.c.l.b16 %v113
    %v197 = vunpack.c.h.b16 %v113
    %v198 = vunpack.c.l.b16 %v114
    %v199 = vunpack.c.h.b16 %v114
    %v200 = vunpack.c.l.b16 %v115
    %v201 = vunpack.c.h.b16 %v115
    %v202 = vunpack.c.l.b16 %v116
    %v203 = vunpack.c.h.b16 %v116
    %v204 = vunpack.c.l.b16 %v117
    %v205 = vunpack.c.h.b16 %v117
    %v206 = vunpack.c.l.b16 %v118
    %v207 = vunpack.c.h.b16 %v118
    %v208 = vunpack.c.l.b16 %v119
    %v209 = vunpack.c.h.b16 %v119
    %v210 = vunpack.c.l.b16 %v120
    %v211 = vunpack.c.h.b16 %v120
    %v212 = vunpack.c.l.b16 %v121
    %v213 = vunpack.c.h.b16 %v121
    %v214 = vunpack.c.l.b16 %v122
    %v215 = vunpack.c.h.b16 %v122
    %v216 = vunpack.c.l.b16 %v123
    %v217 = vunpack.c.h.b16 %v123
    %v218 = vunpack.c.l.b16 %v124
    %v219 = vunpack.c.h.b16 %v124
    %v220 = vunpack.c.l.b16 %v125
    %v221 = vunpack.c.h.b16 %v125
    %v222 = vpack.c.b16 %v162, %v158
    %v223 = vpack.c.b16 %v163, %v159
    %v224 = vpack.c.b16 %v164, %v160
    %v225 = vpack.c.b16 %v165, %v161
    %v226 = vpack.c.b16 %v170, %v166
    %v227 = vpack.c.b16 %v171, %v167
    %v228 = vpack.c.b16 %v172, %v168
    %v229 = vpack.c.b16 %v173, %v169
    %v230 = vpack.c.b16 %v178, %v174
    %v231 = vpack.c.b16 %v179, %v175
    %v232 = vpack.c.b16 %v180, %v176
    %v233 = vpack.c.b16 %v181, %v177
    %v234 = vpack.c.b16 %v186, %v182
    %v235 = vpack.c.b16 %v187, %v183
    %v236 = vpack.c.b16 %v188, %v184
    %v237 = vpack.c.b16 %v189, %v185
    %v238 = vpack.c.b16 %v194, %v190
    %v239 = vpack.c.b16 %v195, %v191
    %v240 = vpack.c.b16 %v196, %v192
    %v241 = vpack.c.b16 %v197, %v193
    %v242 = vpack.c.b16 %v202, %v198
    %v243 = vpack.c.b16 %v203, %v199
    %v244 = vpack.c.b16 %v204, %v200
    %v245 = vpack.c.b16 %v205, %v201
    %v246 = vpack.c.b16 %v210, %v206
    %v247 = vpack.c.b16 %v211, %v207
    %v248 = vpack.c.b16 %v212, %v208
    %v249 = vpack.c.b16 %v213, %v209
    %v250 = vpack.c.b16 %v218, %v214
    %v251 = vpack.c.b16 %v219, %v215
    %v252 = vpack.c.b16 %v220, %v216
    %v253 = vpack.c.b16 %v221, %v217
    %286 = vmatprep.subr.bf16.mxu0 %v251
    %287 = vmatpush1.bf16.msra.mxu0 %v250
    %288 = vmatprep.subr.bf16.mxu0 %v247
    %289 = vmatpush1.bf16.msra.mxu0 %v246
    %290 = vmatprep.subr.bf16.mxu0 %v243
    %291 = vmatpush1.bf16.msra.mxu0 %v242
    %292 = vmatprep.subr.bf16.mxu0 %v239
    %293 = vmatpush1.bf16.msra.mxu0 %v238
    %294 = vmatprep.subr.bf16.mxu0 %v235
    %295 = vmatpush1.bf16.msra.mxu0 %v234
    %296 = vmatprep.subr.bf16.mxu0 %v231
    %297 = vmatpush1.bf16.msra.mxu0 %v230
    %298 = vmatprep.subr.bf16.mxu0 %v227
    %299 = vmatpush1.bf16.msra.mxu0 %v226
    %300 = vmatprep.subr.bf16.mxu0 %v223
    %301 = vmatpush1.bf16.msra.mxu0 %v222
    %302 = vmatprep.subr.bf16.mxu0 0
    %303 = vmatpush2.bf16.msra.mxu0 0
    %304 = vmatprep.subr.bf16.mxu0 0
    %305 = vmatpush2.bf16.msra.mxu0 0
    %306 = vmatprep.subr.bf16.mxu0 0
    %307 = vmatpush2.bf16.msra.mxu0 0
    %308 = vmatprep.subr.bf16.mxu0 0
    %309 = vmatpush2.bf16.msra.mxu0 0
    %310 = vmatprep.subr.bf16.mxu0 0
    %311 = vmatpush2.bf16.msra.mxu0 0
    %312 = vmatprep.subr.bf16.mxu0 0
    %313 = vmatpush2.bf16.msra.mxu0 0
    %314 = vmatprep.subr.bf16.mxu0 0
    %315 = vmatpush2.bf16.msra.mxu0 0
    %316 = vmatprep.subr.bf16.mxu0 0
    %317 = vmatpush2.bf16.msra.mxu0 0
    %318 = vmatprep.mubr.bf16.mxu0 0
    %319 = vmatmul.mubr.bf16.gmra.mxu0 %v93
    %v320 = vpop.f32.mrf.mxu0
    %v321 = vadd.f32 0.0, %v320
    %v322 = vpop.f32.mrf.mxu0
    %v323 = vadd.f32 0.0, %v322
    %v324 = vpop.f32.mrf.mxu0
    %v325 = vadd.f32 0.0, %v324
    %v326 = vpop.f32.mrf.mxu0
    %v327 = vadd.f32 0.0, %v326
    %328 = vdwg.mxu0
    %329 = vmatprep.subr.bf16.mxu0 %v253
    %330 = vmatpush1.bf16.msra.mxu0 %v252
    %331 = vmatprep.subr.bf16.mxu0 %v249
    %332 = vmatpush1.bf16.msra.mxu0 %v248
    %333 = vmatprep.subr.bf16.mxu0 %v245
    %334 = vmatpush1.bf16.msra.mxu0 %v244
    %335 = vmatprep.subr.bf16.mxu0 %v241
    %336 = vmatpush1.bf16.msra.mxu0 %v240
    %337 = vmatprep.subr.bf16.mxu0 %v237
    %338 = vmatpush1.bf16.msra.mxu0 %v236
    %339 = vmatprep.subr.bf16.mxu0 %v233
    %340 = vmatpush1.bf16.msra.mxu0 %v232
    %341 = vmatprep.subr.bf16.mxu0 %v229
    %342 = vmatpush1.bf16.msra.mxu0 %v228
    %343 = vmatprep.subr.bf16.mxu0 %v225
    %344 = vmatpush1.bf16.msra.mxu0 %v224
    %345 = vmatprep.subr.bf16.mxu0 0
    %346 = vmatpush2.bf16.msra.mxu0 0
    %347 = vmatprep.subr.bf16.mxu0 0
    %348 = vmatpush2.bf16.msra.mxu0 0
    %349 = vmatprep.subr.bf16.mxu0 0
    %350 = vmatpush2.bf16.msra.mxu0 0
    %351 = vmatprep.subr.bf16.mxu0 0
    %352 = vmatpush2.bf16.msra.mxu0 0
    %353 = vmatprep.subr.bf16.mxu0 0
    %354 = vmatpush2.bf16.msra.mxu0 0
    %355 = vmatprep.subr.bf16.mxu0 0
    %356 = vmatpush2.bf16.msra.mxu0 0
    %357 = vmatprep.subr.bf16.mxu0 0
    %358 = vmatpush2.bf16.msra.mxu0 0
    %359 = vmatprep.subr.bf16.mxu0 0
    %360 = vmatpush2.bf16.msra.mxu0 0
    %361 = vmatprep.mubr.bf16.mxu0 0
    %362 = vmatmul.mubr.bf16.gmra.mxu0 %v93
    %v363 = vpop.f32.mrf.mxu0
    %v364 = vadd.f32 0.0, %v363
    %v365 = vpop.f32.mrf.mxu0
    %v366 = vadd.f32 0.0, %v365
    %v367 = vpop.f32.mrf.mxu0
    %v368 = vadd.f32 0.0, %v367
    %v369 = vpop.f32.mrf.mxu0
    %v370 = vadd.f32 0.0, %v369
    %371 = vdwg.mxu0
    %v372 = vld [vmem:[#allocation10] ss:$8 sm:$0x3]
    %v374 = vlaneseq
    %v375 = vshrl.u32 %v374, 7
    %v376 = vsub.s32 0, %v375
    %v377 = vrot.slane %v372, %v376
    %v378 = vlaneseq
    %v379 = vshrl.u32 %v378, 7
    %v380 = vsub.s32 1, %v379
    %v381 = vrot.slane %v372, %v380
    %v384 = vadd.f32 %v321, %v377
    %v385 = vadd.f32 %v323, %v381
    %v386 = vadd.f32 %v325, %v377
    %v387 = vadd.f32 %v327, %v381
    %s388 = scalar_lea.vmem [#allocation10], 1
    %v389 = vld [vmem:[%s388] ss:$8 sm:$0x3]
    %s390 = scalar_lea.vmem [#allocation10], 2
    %v391 = vld [vmem:[%s390] ss:$8 sm:$0x3]
    %v392 = vrot.slane %v384, 4
    %v393 = vadd.f32 %v384, %v392
    %v394 = vrot.slane %v393, 2
    %v395 = vadd.f32 %v393, %v394
    %v396 = vrot.slane %v395, 1
    %v397 = vadd.f32 %v395, %v396
    %v398 = vrot.slane %v385, 4
    %v399 = vadd.f32 %v385, %v398
    %v400 = vrot.slane %v399, 2
    %v401 = vadd.f32 %v399, %v400
    %v402 = vrot.slane %v401, 1
    %v403 = vadd.f32 %v401, %v402
    %v404 = vrcp.pop 8.0
    %v405 = vmul.f32 %v397, %v404
    %v406 = vmul.f32 %v403, %v404
    %v407 = vsub.f32 %v384, %v405
    %v408 = vsub.f32 %v385, %v406
    %v409 = vmul.f32 %v407, %v407
    %v410 = vmul.f32 %v408, %v408
    %v411 = vrot.slane %v409, 4
    %v412 = vadd.f32 %v409, %v411
    %v413 = vrot.slane %v412, 2
    %v414 = vadd.f32 %v412, %v413
    %v415 = vrot.slane %v414, 1
    %v416 = vadd.f32 %v414, %v415
    %v417 = vrot.slane %v410, 4
    %v418 = vadd.f32 %v410, %v417
    %v419 = vrot.slane %v418, 2
    %v420 = vadd.f32 %v418, %v419
    %v421 = vrot.slane %v420, 1
    %v422 = vadd.f32 %v420, %v421
    %v423 = vmul.f32 %v416, %v404
    %v424 = vmul.f32 %v422, %v404
    %v425 = vadd.f32 %v423, 1e-05
    %v426 = vadd.f32 %v424, 1e-05
    %v427 = vrsqrt.pop %v425
    %v428 = vrsqrt.pop %v426
    %v429 = vmul.f32 %v407, %v427
    %v430 = vmul.f32 %v408, %v428
    %v431 = vrot.slane %v386, 4
    %v432 = vadd.f32 %v386, %v431
    %v433 = vrot.slane %v432, 2
    %v434 = vadd.f32 %v432, %v433
    %v435 = vrot.slane %v434, 1
    %v436 = vadd.f32 %v434, %v435
    %v437 = vrot.slane %v387, 4
    %v438 = vadd.f32 %v387, %v437
    %v439 = vrot.slane %v438, 2
    %v440 = vadd.f32 %v438, %v439
    %v441 = vrot.slane %v440, 1
    %v442 = vadd.f32 %v440, %v441
    %v443 = vmul.f32 %v436, %v404
    %v444 = vmul.f32 %v442, %v404
    %v445 = vsub.f32 %v386, %v443
    %v446 = vsub.f32 %v387, %v444
    %v447 = vmul.f32 %v445, %v445
    %v448 = vmul.f32 %v446, %v446
    %v449 = vrot.slane %v447, 4
    %v450 = vadd.f32 %v447, %v449
    %v451 = vrot.slane %v450, 2
    %v452 = vadd.f32 %v450, %v451
    %v453 = vrot.slane %v452, 1
    %v454 = vadd.f32 %v452, %v453
    %v455 = vrot.slane %v448, 4
    %v456 = vadd.f32 %v448, %v455
    %v457 = vrot.slane %v456, 2
    %v458 = vadd.f32 %v456, %v457
    %v459 = vrot.slane %v458, 1
    %v460 = vadd.f32 %v458, %v459
    %v461 = vmul.f32 %v454, %v404
    %v462 = vmul.f32 %v460, %v404
    %v463 = vadd.f32 %v461, 1e-05
    %v464 = vadd.f32 %v462, 1e-05
    %v465 = vrsqrt.pop %v463
    %v466 = vrsqrt.pop %v464
    %v467 = vmul.f32 %v445, %v465
    %v468 = vmul.f32 %v446, %v466
    %v470 = vlaneseq
    %v471 = vshrl.u32 %v470, 7
    %v472 = vsub.s32 0, %v471
    %v473 = vrot.slane %v389, %v472
    %v474 = vlaneseq
    %v475 = vshrl.u32 %v474, 7
    %v476 = vsub.s32 1, %v475
    %v477 = vrot.slane %v389, %v476
    %v480 = vmul.f32 %v429, %v473
    %v481 = vmul.f32 %v430, %v477
    %v482 = vmul.f32 %v467, %v473
    %v483 = vmul.f32 %v468, %v477
    %v485 = vlaneseq
    %v486 = vshrl.u32 %v485, 7
    %v487 = vsub.s32 0, %v486
    %v488 = vrot.slane %v391, %v487
    %v489 = vlaneseq
    %v490 = vshrl.u32 %v489, 7
    %v491 = vsub.s32 1, %v490
    %v492 = vrot.slane %v391, %v491
    %v495 = vadd.f32 %v480, %v488
    %v496 = vadd.f32 %v481, %v492
    %v497 = vadd.f32 %v482, %v488
    %v498 = vadd.f32 %v483, %v492
    %v499 = vmul.f32 %v495, 0.5
    %v500 = vmul.f32 %v496, 0.5
    %v501 = vmul.f32 %v497, 0.5
    %v502 = vmul.f32 %v498, 0.5
    %v503 = vmul.f32 %v495, 0.044715
    %v504 = vmul.f32 %v496, 0.044715
    %v505 = vmul.f32 %v497, 0.044715
    %v506 = vmul.f32 %v498, 0.044715
    %v507 = vmul.f32 %v503, %v495
    %v508 = vmul.f32 %v504, %v496
    %v509 = vmul.f32 %v505, %v497
    %v510 = vmul.f32 %v506, %v498
    %v511 = vmul.f32 %v507, %v495
    %v512 = vmul.f32 %v508, %v496
    %v513 = vmul.f32 %v509, %v497
    %v514 = vmul.f32 %v510, %v498
    %v515 = vadd.f32 %v495, %v511
    %v516 = vadd.f32 %v496, %v512
    %v517 = vadd.f32 %v497, %v513
    %v518 = vadd.f32 %v498, %v514
    %v519 = vmul.f32 %v515, 0.7978846
    %v520 = vmul.f32 %v516, 0.7978846
    %v521 = vmul.f32 %v517, 0.7978846
    %v522 = vmul.f32 %v518, 0.7978846
    %v523 = vtanh.pop %v519
    %v524 = vtanh.pop %v520
    %v525 = vtanh.pop %v521
    %v526 = vtanh.pop %v522
    %v527 = vadd.f32 %v523, 1.0
    %v528 = vadd.f32 %v524, 1.0
    %v529 = vadd.f32 %v525, 1.0
    %v530 = vadd.f32 %v526, 1.0
    %v531 = vmul.f32 %v499, %v527
    %v532 = vmul.f32 %v500, %v528
    %v533 = vmul.f32 %v501, %v529
    %v534 = vmul.f32 %v502, %v530
    %s535 = scalar_lea.vmem [#allocation10], 17
    %v536 = vld [vmem:[%s535] ss:$8 sm:$0x3]
    %v538 = vlaneseq
    %v539 = vshrl.u32 %v538, 7
    %v540 = vsub.s32 0, %v539
    %v541 = vrot.slane %v536, %v540
    %v542 = vlaneseq
    %v543 = vshrl.u32 %v542, 7
    %v544 = vsub.s32 1, %v543
    %v545 = vrot.slane %v536, %v544
    %v548 = vadd.f32 %v364, %v541
    %v549 = vadd.f32 %v366, %v545
    %v550 = vadd.f32 %v368, %v541
    %v551 = vadd.f32 %v370, %v545
    %s552 = scalar_lea.vmem [#allocation10], 18
    %v553 = vld [vmem:[%s552] ss:$8 sm:$0x3]
    %s554 = scalar_lea.vmem [#allocation10], 19
    %v555 = vld [vmem:[%s554] ss:$8 sm:$0x3]
    %v556 = vrot.slane %v548, 4
    %v557 = vadd.f32 %v548, %v556
    %v558 = vrot.slane %v557, 2
    %v559 = vadd.f32 %v557, %v558
    %v560 = vrot.slane %v559, 1
    %v561 = vadd.f32 %v559, %v560
    %v562 = vrot.slane %v549, 4
    %v563 = vadd.f32 %v549, %v562
    %v564 = vrot.slane %v563, 2
    %v565 = vadd.f32 %v563, %v564
    %v566 = vrot.slane %v565, 1
    %v567 = vadd.f32 %v565, %v566
    %v568 = vmul.f32 %v561, %v404
    %v569 = vmul.f32 %v567, %v404
    %v570 = vsub.f32 %v548, %v568
    %v571 = vsub.f32 %v549, %v569
    %v572 = vmul.f32 %v570, %v570
    %v573 = vmul.f32 %v571, %v571
    %v574 = vrot.slane %v572, 4
    %v575 = vadd.f32 %v572, %v574
    %v576 = vrot.slane %v575, 2
    %v577 = vadd.f32 %v575, %v576
    %v578 = vrot.slane %v577, 1
    %v579 = vadd.f32 %v577, %v578
    %v580 = vrot.slane %v573, 4
    %v581 = vadd.f32 %v573, %v580
    %v582 = vrot.slane %v581, 2
    %v583 = vadd.f32 %v581, %v582
    %v584 = vrot.slane %v583, 1
    %v585 = vadd.f32 %v583, %v584
    %v586 = vmul.f32 %v579, %v404
    %v587 = vmul.f32 %v585, %v404
    %v588 = vadd.f32 %v586, 1e-05
    %v589 = vadd.f32 %v587, 1e-05
    %v590 = vrsqrt.pop %v588
    %v591 = vrsqrt.pop %v589
    %v592 = vmul.f32 %v570, %v590
    %v593 = vmul.f32 %v571, %v591
    %v594 = vrot.slane %v550, 4
    %v595 = vadd.f32 %v550, %v594
    %v596 = vrot.slane %v595, 2
    %v597 = vadd.f32 %v595, %v596
    %v598 = vrot.slane %v597, 1
    %v599 = vadd.f32 %v597, %v598
    %v600 = vrot.slane %v551, 4
    %v601 = vadd.f32 %v551, %v600
    %v602 = vrot.slane %v601, 2
    %v603 = vadd.f32 %v601, %v602
    %v604 = vrot.slane %v603, 1
    %v605 = vadd.f32 %v603, %v604
    %v606 = vmul.f32 %v599, %v404
    %v607 = vmul.f32 %v605, %v404
    %v608 = vsub.f32 %v550, %v606
    %v609 = vsub.f32 %v551, %v607
    %v610 = vmul.f32 %v608, %v608
    %v611 = vmul.f32 %v609, %v609
    %v612 = vrot.slane %v610, 4
    %v613 = vadd.f32 %v610, %v612
    %v614 = vrot.slane %v613, 2
    %v615 = vadd.f32 %v613, %v614
    %v616 = vrot.slane %v615, 1
    %v617 = vadd.f32 %v615, %v616
    %v618 = vrot.slane %v611, 4
    %v619 = vadd.f32 %v611, %v618
    %v620 = vrot.slane %v619, 2
    %v621 = vadd.f32 %v619, %v620
    %v622 = vrot.slane %v621, 1
    %v623 = vadd.f32 %v621, %v622
    %v624 = vmul.f32 %v617, %v404
    %v625 = vmul.f32 %v623, %v404
    %v626 = vadd.f32 %v624, 1e-05
    %v627 = vadd.f32 %v625, 1e-05
    %v628 = vrsqrt.pop %v626
    %v629 = vrsqrt.pop %v627
    %v630 = vmul.f32 %v608, %v628
    %v631 = vmul.f32 %v609, %v629
    %v633 = vlaneseq
    %v634 = vshrl.u32 %v633, 7
    %v635 = vsub.s32 0, %v634
    %v636 = vrot.slane %v553, %v635
    %v637 = vlaneseq
    %v638 = vshrl.u32 %v637, 7
    %v639 = vsub.s32 1, %v638
    %v640 = vrot.slane %v553, %v639
    %v643 = vmul.f32 %v592, %v636
    %v644 = vmul.f32 %v593, %v640
    %v645 = vmul.f32 %v630, %v636
    %v646 = vmul.f32 %v631, %v640
    %v648 = vlaneseq
    %v649 = vshrl.u32 %v648, 7
    %v650 = vsub.s32 0, %v649
    %v651 = vrot.slane %v555, %v650
    %v652 = vlaneseq
    %v653 = vshrl.u32 %v652, 7
    %v654 = vsub.s32 1, %v653
    %v655 = vrot.slane %v555, %v654
    %v658 = vadd.f32 %v643, %v651
    %v659 = vadd.f32 %v644, %v655
    %v660 = vadd.f32 %v645, %v651
    %v661 = vadd.f32 %v646, %v655
    %v662 = vpack.c.bf16 %v533, %v531
    %v663 = vpack.c.bf16 %v534, %v532
    %v664 = vld [vmem:[#allocation7] sm:$0xff]
    %v665 = vld [vmem:[#allocation7 + $0x8] sm:$0xff]
    %v666 = vld [vmem:[#allocation7 + $0x10] sm:$0xff]
    %v667 = vld [vmem:[#allocation7 + $0x18] sm:$0xff]
    %v668 = vld [vmem:[#allocation7 + $0x20] sm:$0xff]
    %v669 = vld [vmem:[#allocation7 + $0x28] sm:$0xff]
    %v670 = vld [vmem:[#allocation7 + $0x30] sm:$0xff]
    %v671 = vld [vmem:[#allocation7 + $0x38] sm:$0xff]
    %v672 = vld [vmem:[#allocation7 + $0x40] sm:$0xff]
    %v673 = vld [vmem:[#allocation7 + $0x48] sm:$0xff]
    %v674 = vld [vmem:[#allocation7 + $0x50] sm:$0xff]
    %v675 = vld [vmem:[#allocation7 + $0x58] sm:$0xff]
    %v676 = vld [vmem:[#allocation7 + $0x60] sm:$0xff]
    %v677 = vld [vmem:[#allocation7 + $0x68] sm:$0xff]
    %v678 = vld [vmem:[#allocation7 + $0x70] sm:$0xff]
    %v679 = vld [vmem:[#allocation7 + $0x78] sm:$0xff]
    %v680 = vld [vmem:[#allocation7 + $0x80] sm:$0xff]
    %v681 = vld [vmem:[#allocation7 + $0x88] sm:$0xff]
    %v682 = vld [vmem:[#allocation7 + $0x90] sm:$0xff]
    %v683 = vld [vmem:[#allocation7 + $0x98] sm:$0xff]
    %v684 = vld [vmem:[#allocation7 + $0xa0] sm:$0xff]
    %v685 = vld [vmem:[#allocation7 + $0xa8] sm:$0xff]
    %v686 = vld [vmem:[#allocation7 + $0xb0] sm:$0xff]
    %v687 = vld [vmem:[#allocation7 + $0xb8] sm:$0xff]
    %v688 = vld [vmem:[#allocation7 + $0xc0] sm:$0xff]
    %v689 = vld [vmem:[#allocation7 + $0xc8] sm:$0xff]
    %v690 = vld [vmem:[#allocation7 + $0xd0] sm:$0xff]
    %v691 = vld [vmem:[#allocation7 + $0xd8] sm:$0xff]
    %v692 = vld [vmem:[#allocation7 + $0xe0] sm:$0xff]
    %v693 = vld [vmem:[#allocation7 + $0xe8] sm:$0xff]
    %v694 = vld [vmem:[#allocation7 + $0xf0] sm:$0xff]
    %v695 = vld [vmem:[#allocation7 + $0xf8] sm:$0xff]
    %s696 = scalar_lea.vmem [#allocation10], 3
    %v697 = vld [vmem:[%s696] ss:$8 sm:$0x3]
    %v699 = vlaneseq
    %v700 = vshrl.u32 %v699, 7
    %v701 = vsub.s32 0, %v700
    %v702 = vrot.slane %v697, %v701
    %v703 = vlaneseq
    %v704 = vshrl.u32 %v703, 7
    %v705 = vsub.s32 1, %v704
    %v706 = vrot.slane %v697, %v705
    %v741 = vunpack.c.l.b16 %v664
    %v742 = vunpack.c.h.b16 %v664
    %v743 = vunpack.c.l.b16 %v665
    %v744 = vunpack.c.h.b16 %v665
    %v745 = vunpack.c.l.b16 %v666
    %v746 = vunpack.c.h.b16 %v666
    %v747 = vunpack.c.l.b16 %v667
    %v748 = vunpack.c.h.b16 %v667
    %v749 = vunpack.c.l.b16 %v668
    %v750 = vunpack.c.h.b16 %v668
    %v751 = vunpack.c.l.b16 %v669
    %v752 = vunpack.c.h.b16 %v669
    %v753 = vunpack.c.l.b16 %v670
    %v754 = vunpack.c.h.b16 %v670
    %v755 = vunpack.c.l.b16 %v671
    %v756 = vunpack.c.h.b16 %v671
    %v757 = vunpack.c.l.b16 %v672
    %v758 = vunpack.c.h.b16 %v672
    %v759 = vunpack.c.l.b16 %v673
    %v760 = vunpack.c.h.b16 %v673
    %v761 = vunpack.c.l.b16 %v674
    %v762 = vunpack.c.h.b16 %v674
    %v763 = vunpack.c.l.b16 %v675
    %v764 = vunpack.c.h.b16 %v675
    %v765 = vunpack.c.l.b16 %v676
    %v766 = vunpack.c.h.b16 %v676
    %v767 = vunpack.c.l.b16 %v677
    %v768 = vunpack.c.h.b16 %v677
    %v769 = vunpack.c.l.b16 %v678
    %v770 = vunpack.c.h.b16 %v678
    %v771 = vunpack.c.l.b16 %v679
    %v772 = vunpack.c.h.b16 %v679
    %v773 = vunpack.c.l.b16 %v680
    %v774 = vunpack.c.h.b16 %v680
    %v775 = vunpack.c.l.b16 %v681
    %v776 = vunpack.c.h.b16 %v681
    %v777 = vunpack.c.l.b16 %v682
    %v778 = vunpack.c.h.b16 %v682
    %v779 = vunpack.c.l.b16 %v683
    %v780 = vunpack.c.h.b16 %v683
    %v781 = vunpack.c.l.b16 %v684
    %v782 = vunpack.c.h.b16 %v684
    %v783 = vunpack.c.l.b16 %v685
    %v784 = vunpack.c.h.b16 %v685
    %v785 = vunpack.c.l.b16 %v686
    %v786 = vunpack.c.h.b16 %v686
    %v787 = vunpack.c.l.b16 %v687
    %v788 = vunpack.c.h.b16 %v687
    %v789 = vunpack.c.l.b16 %v688
    %v790 = vunpack.c.h.b16 %v688
    %v791 = vunpack.c.l.b16 %v689
    %v792 = vunpack.c.h.b16 %v689
    %v793 = vunpack.c.l.b16 %v690
    %v794 = vunpack.c.h.b16 %v690
    %v795 = vunpack.c.l.b16 %v691
    %v796 = vunpack.c.h.b16 %v691
    %v797 = vunpack.c.l.b16 %v692
    %v798 = vunpack.c.h.b16 %v692
    %v799 = vunpack.c.l.b16 %v693
    %v800 = vunpack.c.h.b16 %v693
    %v801 = vunpack.c.l.b16 %v694
    %v802 = vunpack.c.h.b16 %v694
    %v803 = vunpack.c.l.b16 %v695
    %v804 = vunpack.c.h.b16 %v695
    %v805 = vpack.c.b16 %v743, %v741
    %v806 = vpack.c.b16 %v744, %v742
    %v807 = vpack.c.b16 %v747, %v745
    %v808 = vpack.c.b16 %v748, %v746
    %v809 = vpack.c.b16 %v751, %v749
    %v810 = vpack.c.b16 %v752, %v750
    %v811 = vpack.c.b16 %v755, %v753
    %v812 = vpack.c.b16 %v756, %v754
    %v813 = vpack.c.b16 %v759, %v757
    %v814 = vpack.c.b16 %v760, %v758
    %v815 = vpack.c.b16 %v763, %v761
    %v816 = vpack.c.b16 %v764, %v762
    %v817 = vpack.c.b16 %v767, %v765
    %v818 = vpack.c.b16 %v768, %v766
    %v819 = vpack.c.b16 %v771, %v769
    %v820 = vpack.c.b16 %v772, %v770
    %v821 = vpack.c.b16 %v775, %v773
    %v822 = vpack.c.b16 %v776, %v774
    %v823 = vpack.c.b16 %v779, %v777
    %v824 = vpack.c.b16 %v780, %v778
    %v825 = vpack.c.b16 %v783, %v781
    %v826 = vpack.c.b16 %v784, %v782
    %v827 = vpack.c.b16 %v787, %v785
    %v828 = vpack.c.b16 %v788, %v786
    %v829 = vpack.c.b16 %v791, %v789
    %v830 = vpack.c.b16 %v792, %v790
    %v831 = vpack.c.b16 %v795, %v793
    %v832 = vpack.c.b16 %v796, %v794
    %v833 = vpack.c.b16 %v799, %v797
    %v834 = vpack.c.b16 %v800, %v798
    %v835 = vpack.c.b16 %v803, %v801
    %v836 = vpack.c.b16 %v804, %v802
    %869 = vmatprep.subr.bf16.mxu0 %v820
    %870 = vmatpush1.bf16.msra.mxu0 %v819
    %871 = vmatprep.subr.bf16.mxu0 %v818
    %872 = vmatpush1.bf16.msra.mxu0 %v817
    %873 = vmatprep.subr.bf16.mxu0 %v816
    %874 = vmatpush1.bf16.msra.mxu0 %v815
    %875 = vmatprep.subr.bf16.mxu0 %v814
    %876 = vmatpush1.bf16.msra.mxu0 %v813
    %877 = vmatprep.subr.bf16.mxu0 %v812
    %878 = vmatpush1.bf16.msra.mxu0 %v811
    %879 = vmatprep.subr.bf16.mxu0 %v810
    %880 = vmatpush1.bf16.msra.mxu0 %v809
    %881 = vmatprep.subr.bf16.mxu0 %v808
    %882 = vmatpush1.bf16.msra.mxu0 %v807
    %883 = vmatprep.subr.bf16.mxu0 %v806
    %884 = vmatpush1.bf16.msra.mxu0 %v805
    %885 = vmatprep.subr.bf16.mxu0 %v836
    %886 = vmatpush2.bf16.msra.mxu0 %v835
    %887 = vmatprep.subr.bf16.mxu0 %v834
    %888 = vmatpush2.bf16.msra.mxu0 %v833
    %889 = vmatprep.subr.bf16.mxu0 %v832
    %890 = vmatpush2.bf16.msra.mxu0 %v831
    %891 = vmatprep.subr.bf16.mxu0 %v830
    %892 = vmatpush2.bf16.msra.mxu0 %v829
    %893 = vmatprep.subr.bf16.mxu0 %v828
    %894 = vmatpush2.bf16.msra.mxu0 %v827
    %895 = vmatprep.subr.bf16.mxu0 %v826
    %896 = vmatpush2.bf16.msra.mxu0 %v825
    %897 = vmatprep.subr.bf16.mxu0 %v824
    %898 = vmatpush2.bf16.msra.mxu0 %v823
    %899 = vmatprep.subr.bf16.mxu0 %v822
    %900 = vmatpush2.bf16.msra.mxu0 %v821
    %901 = vmatprep.mubr.bf16.mxu0 %v663
    %902 = vmatmul.mubr.bf16.gmra.mxu0 %v662
    %v903 = vpop.f32.mrf.mxu0
    %v904 = vadd.f32 %v702, %v903
    %v905 = vpop.f32.mrf.mxu0
    %v906 = vadd.f32 %v706, %v905
    %v907 = vpop.f32.mrf.mxu0
    %v908 = vadd.f32 %v702, %v907
    %v909 = vpop.f32.mrf.mxu0
    %v910 = vadd.f32 %v706, %v909
    %911 = vdwg.mxu0
    %s912 = scalar_lea.vmem [#allocation10], 4
    %v913 = vld [vmem:[%s912] ss:$8 sm:$0x3]
    %s914 = scalar_lea.vmem [#allocation10], 5
    %v915 = vld [vmem:[%s914] ss:$8 sm:$0x3]
    %v916 = vrot.slane %v904, 4
    %v917 = vadd.f32 %v904, %v916
    %v918 = vrot.slane %v917, 2
    %v919 = vadd.f32 %v917, %v918
    %v920 = vrot.slane %v919, 1
    %v921 = vadd.f32 %v919, %v920
    %v922 = vrot.slane %v906, 4
    %v923 = vadd.f32 %v906, %v922
    %v924 = vrot.slane %v923, 2
    %v925 = vadd.f32 %v923, %v924
    %v926 = vrot.slane %v925, 1
    %v927 = vadd.f32 %v925, %v926
    %v928 = vmul.f32 %v921, %v404
    %v929 = vmul.f32 %v927, %v404
    %v930 = vsub.f32 %v904, %v928
    %v931 = vsub.f32 %v906, %v929
    %v932 = vmul.f32 %v930, %v930
    %v933 = vmul.f32 %v931, %v931
    %v934 = vrot.slane %v932, 4
    %v935 = vadd.f32 %v932, %v934
    %v936 = vrot.slane %v935, 2
    %v937 = vadd.f32 %v935, %v936
    %v938 = vrot.slane %v937, 1
    %v939 = vadd.f32 %v937, %v938
    %v940 = vrot.slane %v933, 4
    %v941 = vadd.f32 %v933, %v940
    %v942 = vrot.slane %v941, 2
    %v943 = vadd.f32 %v941, %v942
    %v944 = vrot.slane %v943, 1
    %v945 = vadd.f32 %v943, %v944
    %v946 = vmul.f32 %v939, %v404
    %v947 = vmul.f32 %v945, %v404
    %v948 = vadd.f32 %v946, 1e-05
    %v949 = vadd.f32 %v947, 1e-05
    %v950 = vrsqrt.pop %v948
    %v951 = vrsqrt.pop %v949
    %v952 = vmul.f32 %v930, %v950
    %v953 = vmul.f32 %v931, %v951
    %v954 = vrot.slane %v908, 4
    %v955 = vadd.f32 %v908, %v954
    %v956 = vrot.slane %v955, 2
    %v957 = vadd.f32 %v955, %v956
    %v958 = vrot.slane %v957, 1
    %v959 = vadd.f32 %v957, %v958
    %v960 = vrot.slane %v910, 4
    %v961 = vadd.f32 %v910, %v960
    %v962 = vrot.slane %v961, 2
    %v963 = vadd.f32 %v961, %v962
    %v964 = vrot.slane %v963, 1
    %v965 = vadd.f32 %v963, %v964
    %v966 = vmul.f32 %v959, %v404
    %v967 = vmul.f32 %v965, %v404
    %v968 = vsub.f32 %v908, %v966
    %v969 = vsub.f32 %v910, %v967
    %v970 = vmul.f32 %v968, %v968
    %v971 = vmul.f32 %v969, %v969
    %v972 = vrot.slane %v970, 4
    %v973 = vadd.f32 %v970, %v972
    %v974 = vrot.slane %v973, 2
    %v975 = vadd.f32 %v973, %v974
    %v976 = vrot.slane %v975, 1
    %v977 = vadd.f32 %v975, %v976
    %v978 = vrot.slane %v971, 4
    %v979 = vadd.f32 %v971, %v978
    %v980 = vrot.slane %v979, 2
    %v981 = vadd.f32 %v979, %v980
    %v982 = vrot.slane %v981, 1
    %v983 = vadd.f32 %v981, %v982
    %v984 = vmul.f32 %v977, %v404
    %v985 = vmul.f32 %v983, %v404
    %v986 = vadd.f32 %v984, 1e-05
    %v987 = vadd.f32 %v985, 1e-05
    %v988 = vrsqrt.pop %v986
    %v989 = vrsqrt.pop %v987
    %v990 = vmul.f32 %v968, %v988
    %v991 = vmul.f32 %v969, %v989
    %v993 = vlaneseq
    %v994 = vshrl.u32 %v993, 7
    %v995 = vsub.s32 0, %v994
    %v996 = vrot.slane %v913, %v995
    %v997 = vlaneseq
    %v998 = vshrl.u32 %v997, 7
    %v999 = vsub.s32 1, %v998
    %v1000 = vrot.slane %v913, %v999
    %v1003 = vmul.f32 %v952, %v996
    %v1004 = vmul.f32 %v953, %v1000
    %v1005 = vmul.f32 %v990, %v996
    %v1006 = vmul.f32 %v991, %v1000
    %v1008 = vlaneseq
    %v1009 = vshrl.u32 %v1008, 7
    %v1010 = vsub.s32 0, %v1009
    %v1011 = vrot.slane %v915, %v1010
    %v1012 = vlaneseq
    %v1013 = vshrl.u32 %v1012, 7
    %v1014 = vsub.s32 1, %v1013
    %v1015 = vrot.slane %v915, %v1014
    %v1018 = vadd.f32 %v1003, %v1011
    %v1019 = vadd.f32 %v1004, %v1015
    %v1020 = vadd.f32 %v1005, %v1011
    %v1021 = vadd.f32 %v1006, %v1015
    %v1022 = vmul.f32 %v1018, 0.5
    %v1023 = vmul.f32 %v1019, 0.5
    %v1024 = vmul.f32 %v1020, 0.5
    %v1025 = vmul.f32 %v1021, 0.5
    %v1026 = vmul.f32 %v1018, 0.044715
    %v1027 = vmul.f32 %v1019, 0.044715
    %v1028 = vmul.f32 %v1020, 0.044715
    %v1029 = vmul.f32 %v1021, 0.044715
    %v1030 = vmul.f32 %v1026, %v1018
    %v1031 = vmul.f32 %v1027, %v1019
    %v1032 = vmul.f32 %v1028, %v1020
    %v1033 = vmul.f32 %v1029, %v1021
    %v1034 = vmul.f32 %v1030, %v1018
    %v1035 = vmul.f32 %v1031, %v1019
    %v1036 = vmul.f32 %v1032, %v1020
    %v1037 = vmul.f32 %v1033, %v1021
    %v1038 = vadd.f32 %v1018, %v1034
    %v1039 = vadd.f32 %v1019, %v1035
    %v1040 = vadd.f32 %v1020, %v1036
    %v1041 = vadd.f32 %v1021, %v1037
    %v1042 = vmul.f32 %v1038, 0.7978846
    %v1043 = vmul.f32 %v1039, 0.7978846
    %v1044 = vmul.f32 %v1040, 0.7978846
    %v1045 = vmul.f32 %v1041, 0.7978846
    %v1046 = vtanh.pop %v1042
    %v1047 = vtanh.pop %v1043
    %v1048 = vtanh.pop %v1044
    %v1049 = vtanh.pop %v1045
    %v1050 = vadd.f32 %v1046, 1.0
    %v1051 = vadd.f32 %v1047, 1.0
    %v1052 = vadd.f32 %v1048, 1.0
    %v1053 = vadd.f32 %v1049, 1.0
    %v1054 = vmul.f32 %v1022, %v1050
    %v1055 = vmul.f32 %v1023, %v1051
    %v1056 = vmul.f32 %v1024, %v1052
    %v1057 = vmul.f32 %v1025, %v1053
    %v1058 = vld [vmem:[#allocation8] sm:$0xff]
    %v1059 = vld [vmem:[#allocation8 + $0x8] sm:$0xff]
    %v1060 = vld [vmem:[#allocation8 + $0x10] sm:$0xff]
    %v1061 = vld [vmem:[#allocation8 + $0x18] sm:$0xff]
    %v1062 = vld [vmem:[#allocation8 + $0x20] sm:$0xff]
    %v1063 = vld [vmem:[#allocation8 + $0x28] sm:$0xff]
    %v1064 = vld [vmem:[#allocation8 + $0x30] sm:$0xff]
    %v1065 = vld [vmem:[#allocation8 + $0x38] sm:$0xff]
    %v1066 = vld [vmem:[#allocation8 + $0x40] sm:$0xff]
    %v1067 = vld [vmem:[#allocation8 + $0x48] sm:$0xff]
    %v1068 = vld [vmem:[#allocation8 + $0x50] sm:$0xff]
    %v1069 = vld [vmem:[#allocation8 + $0x58] sm:$0xff]
    %v1070 = vld [vmem:[#allocation8 + $0x60] sm:$0xff]
    %v1071 = vld [vmem:[#allocation8 + $0x68] sm:$0xff]
    %v1072 = vld [vmem:[#allocation8 + $0x70] sm:$0xff]
    %v1073 = vld [vmem:[#allocation8 + $0x78] sm:$0xff]
    %v1074 = vld [vmem:[#allocation8 + $0x80] sm:$0xff]
    %v1075 = vld [vmem:[#allocation8 + $0x88] sm:$0xff]
    %v1076 = vld [vmem:[#allocation8 + $0x90] sm:$0xff]
    %v1077 = vld [vmem:[#allocation8 + $0x98] sm:$0xff]
    %v1078 = vld [vmem:[#allocation8 + $0xa0] sm:$0xff]
    %v1079 = vld [vmem:[#allocation8 + $0xa8] sm:$0xff]
    %v1080 = vld [vmem:[#allocation8 + $0xb0] sm:$0xff]
    %v1081 = vld [vmem:[#allocation8 + $0xb8] sm:$0xff]
    %v1082 = vld [vmem:[#allocation8 + $0xc0] sm:$0xff]
    %v1083 = vld [vmem:[#allocation8 + $0xc8] sm:$0xff]
    %v1084 = vld [vmem:[#allocation8 + $0xd0] sm:$0xff]
    %v1085 = vld [vmem:[#allocation8 + $0xd8] sm:$0xff]
    %v1086 = vld [vmem:[#allocation8 + $0xe0] sm:$0xff]
    %v1087 = vld [vmem:[#allocation8 + $0xe8] sm:$0xff]
    %v1088 = vld [vmem:[#allocation8 + $0xf0] sm:$0xff]
    %v1089 = vld [vmem:[#allocation8 + $0xf8] sm:$0xff]
    %v1090 = vld [vmem:[#allocation8 + $0x100] sm:$0xff]
    %v1091 = vld [vmem:[#allocation8 + $0x108] sm:$0xff]
    %v1092 = vld [vmem:[#allocation8 + $0x110] sm:$0xff]
    %v1093 = vld [vmem:[#allocation8 + $0x118] sm:$0xff]
    %v1094 = vld [vmem:[#allocation8 + $0x120] sm:$0xff]
    %v1095 = vld [vmem:[#allocation8 + $0x128] sm:$0xff]
    %v1096 = vld [vmem:[#allocation8 + $0x130] sm:$0xff]
    %v1097 = vld [vmem:[#allocation8 + $0x138] sm:$0xff]
    %v1098 = vld [vmem:[#allocation8 + $0x140] sm:$0xff]
    %v1099 = vld [vmem:[#allocation8 + $0x148] sm:$0xff]
    %v1100 = vld [vmem:[#allocation8 + $0x150] sm:$0xff]
    %v1101 = vld [vmem:[#allocation8 + $0x158] sm:$0xff]
    %v1102 = vld [vmem:[#allocation8 + $0x160] sm:$0xff]
    %v1103 = vld [vmem:[#allocation8 + $0x168] sm:$0xff]
    %v1104 = vld [vmem:[#allocation8 + $0x170] sm:$0xff]
    %v1105 = vld [vmem:[#allocation8 + $0x178] sm:$0xff]
    %v1106 = vld [vmem:[#allocation8 + $0x180] sm:$0xff]
    %v1107 = vld [vmem:[#allocation8 + $0x188] sm:$0xff]
    %v1108 = vld [vmem:[#allocation8 + $0x190] sm:$0xff]
    %v1109 = vld [vmem:[#allocation8 + $0x198] sm:$0xff]
    %v1110 = vld [vmem:[#allocation8 + $0x1a0] sm:$0xff]
    %v1111 = vld [vmem:[#allocation8 + $0x1a8] sm:$0xff]
    %v1112 = vld [vmem:[#allocation8 + $0x1b0] sm:$0xff]
    %v1113 = vld [vmem:[#allocation8 + $0x1b8] sm:$0xff]
    %v1114 = vld [vmem:[#allocation8 + $0x1c0] sm:$0xff]
    %v1115 = vld [vmem:[#allocation8 + $0x1c8] sm:$0xff]
    %v1116 = vld [vmem:[#allocation8 + $0x1d0] sm:$0xff]
    %v1117 = vld [vmem:[#allocation8 + $0x1d8] sm:$0xff]
    %v1118 = vld [vmem:[#allocation8 + $0x1e0] sm:$0xff]
    %v1119 = vld [vmem:[#allocation8 + $0x1e8] sm:$0xff]
    %v1120 = vld [vmem:[#allocation8 + $0x1f0] sm:$0xff]
    %v1121 = vld [vmem:[#allocation8 + $0x1f8] sm:$0xff]
    %s1122 = scalar_lea.vmem [#allocation10], 6
    %v1123 = vld [vmem:[%s1122] ss:$8 sm:$0x3]
    %v1125 = vlaneseq
    %v1126 = vshrl.u32 %v1125, 7
    %v1127 = vsub.s32 0, %v1126
    %v1128 = vrot.slane %v1123, %v1127
    %v1129 = vlaneseq
    %v1130 = vshrl.u32 %v1129, 7
    %v1131 = vsub.s32 1, %v1130
    %v1132 = vrot.slane %v1123, %v1131
    %1135 = vmatprep.subr.mxu0 %v1089
    %1136 = vmatpush1.msra.mxu0 %v1088
    %1137 = vmatprep.subr.mxu0 %v1087
    %1138 = vmatpush1.msra.mxu0 %v1086
    %1139 = vmatprep.subr.mxu0 %v1085
    %1140 = vmatpush1.msra.mxu0 %v1084
    %1141 = vmatprep.subr.mxu0 %v1083
    %1142 = vmatpush1.msra.mxu0 %v1082
    %1143 = vmatprep.subr.mxu0 %v1081
    %1144 = vmatpush1.msra.mxu0 %v1080
    %1145 = vmatprep.subr.mxu0 %v1079
    %1146 = vmatpush1.msra.mxu0 %v1078
    %1147 = vmatprep.subr.mxu0 %v1077
    %1148 = vmatpush1.msra.mxu0 %v1076
    %1149 = vmatprep.subr.mxu0 %v1075
    %1150 = vmatpush1.msra.mxu0 %v1074
    %1151 = vmatprep.subr.mxu0 %v1073
    %1152 = vmatpush1.msra.mxu0 %v1072
    %1153 = vmatprep.subr.mxu0 %v1071
    %1154 = vmatpush1.msra.mxu0 %v1070
    %1155 = vmatprep.subr.mxu0 %v1069
    %1156 = vmatpush1.msra.mxu0 %v1068
    %1157 = vmatprep.subr.mxu0 %v1067
    %1158 = vmatpush1.msra.mxu0 %v1066
    %1159 = vmatprep.subr.mxu0 %v1065
    %1160 = vmatpush1.msra.mxu0 %v1064
    %1161 = vmatprep.subr.mxu0 %v1063
    %1162 = vmatpush1.msra.mxu0 %v1062
    %1163 = vmatprep.subr.mxu0 %v1061
    %1164 = vmatpush1.msra.mxu0 %v1060
    %1165 = vmatprep.subr.mxu0 %v1059
    %1166 = vmatpush1.msra.mxu0 %v1058
    %1167 = vmatprep.subr.mxu0 %v1121
    %1168 = vmatpush2.msra.mxu0 %v1120
    %1169 = vmatprep.subr.mxu0 %v1119
    %1170 = vmatpush2.msra.mxu0 %v1118
    %1171 = vmatprep.subr.mxu0 %v1117
    %1172 = vmatpush2.msra.mxu0 %v1116
    %1173 = vmatprep.subr.mxu0 %v1115
    %1174 = vmatpush2.msra.mxu0 %v1114
    %1175 = vmatprep.subr.mxu0 %v1113
    %1176 = vmatpush2.msra.mxu0 %v1112
    %1177 = vmatprep.subr.mxu0 %v1111
    %1178 = vmatpush2.msra.mxu0 %v1110
    %1179 = vmatprep.subr.mxu0 %v1109
    %1180 = vmatpush2.msra.mxu0 %v1108
    %1181 = vmatprep.subr.mxu0 %v1107
    %1182 = vmatpush2.msra.mxu0 %v1106
    %1183 = vmatprep.subr.mxu0 %v1105
    %1184 = vmatpush2.msra.mxu0 %v1104
    %1185 = vmatprep.subr.mxu0 %v1103
    %1186 = vmatpush2.msra.mxu0 %v1102
    %1187 = vmatprep.subr.mxu0 %v1101
    %1188 = vmatpush2.msra.mxu0 %v1100
    %1189 = vmatprep.subr.mxu0 %v1099
    %1190 = vmatpush2.msra.mxu0 %v1098
    %1191 = vmatprep.subr.mxu0 %v1097
    %1192 = vmatpush2.msra.mxu0 %v1096
    %1193 = vmatprep.subr.mxu0 %v1095
    %1194 = vmatpush2.msra.mxu0 %v1094
    %1195 = vmatprep.subr.mxu0 %v1093
    %1196 = vmatpush2.msra.mxu0 %v1092
    %1197 = vmatprep.subr.mxu0 %v1091
    %1198 = vmatpush2.msra.mxu0 %v1090
    %1199 = vmatprep.mubr.f32.mxu0 %v1055
    %1200 = vmatmul.mubr.f32.gmra.mxu0 %v1054
    %v1201 = vpop.f32.mrf.mxu0
    %v1202 = vadd.f32 %v1128, %v1201
    %v1203 = vpop.f32.mrf.mxu0
    %v1204 = vadd.f32 %v1132, %v1203
    %1205 = vmatprep.mubr.f32.mxu0 %v1057
    %1206 = vmatmul.mubr.f32.gmra.mxu0 %v1056
    %v1207 = vpop.f32.mrf.mxu0
    %v1208 = vadd.f32 %v1128, %v1207
    %v1209 = vpop.f32.mrf.mxu0
    %v1210 = vadd.f32 %v1132, %v1209
    %1211 = vdwg.mxu0
    %s1212 = scalar_lea.vmem [#allocation10], 7
    %v1213 = vld [vmem:[%s1212] ss:$8 sm:$0x3]
    %s1214 = scalar_lea.vmem [#allocation10], 16
    %v1215 = vld [vmem:[%s1214] ss:$8 sm:$0x3]
    %v1216 = vrot.slane %v1202, 4
    %v1217 = vadd.f32 %v1202, %v1216
    %v1218 = vrot.slane %v1217, 2
    %v1219 = vadd.f32 %v1217, %v1218
    %v1220 = vrot.slane %v1219, 1
    %v1221 = vadd.f32 %v1219, %v1220
    %v1222 = vrot.slane %v1204, 4
    %v1223 = vadd.f32 %v1204, %v1222
    %v1224 = vrot.slane %v1223, 2
    %v1225 = vadd.f32 %v1223, %v1224
    %v1226 = vrot.slane %v1225, 1
    %v1227 = vadd.f32 %v1225, %v1226
    %v1228 = vmul.f32 %v1221, %v404
    %v1229 = vmul.f32 %v1227, %v404
    %v1230 = vsub.f32 %v1202, %v1228
    %v1231 = vsub.f32 %v1204, %v1229
    %v1232 = vmul.f32 %v1230, %v1230
    %v1233 = vmul.f32 %v1231, %v1231
    %v1234 = vrot.slane %v1232, 4
    %v1235 = vadd.f32 %v1232, %v1234
    %v1236 = vrot.slane %v1235, 2
    %v1237 = vadd.f32 %v1235, %v1236
    %v1238 = vrot.slane %v1237, 1
    %v1239 = vadd.f32 %v1237, %v1238
    %v1240 = vrot.slane %v1233, 4
    %v1241 = vadd.f32 %v1233, %v1240
    %v1242 = vrot.slane %v1241, 2
    %v1243 = vadd.f32 %v1241, %v1242
    %v1244 = vrot.slane %v1243, 1
    %v1245 = vadd.f32 %v1243, %v1244
    %v1246 = vmul.f32 %v1239, %v404
    %v1247 = vmul.f32 %v1245, %v404
    %v1248 = vadd.f32 %v1246, 1e-05
    %v1249 = vadd.f32 %v1247, 1e-05
    %v1250 = vrsqrt.pop %v1248
    %v1251 = vrsqrt.pop %v1249
    %v1252 = vmul.f32 %v1230, %v1250
    %v1253 = vmul.f32 %v1231, %v1251
    %v1254 = vrot.slane %v1208, 4
    %v1255 = vadd.f32 %v1208, %v1254
    %v1256 = vrot.slane %v1255, 2
    %v1257 = vadd.f32 %v1255, %v1256
    %v1258 = vrot.slane %v1257, 1
    %v1259 = vadd.f32 %v1257, %v1258
    %v1260 = vrot.slane %v1210, 4
    %v1261 = vadd.f32 %v1210, %v1260
    %v1262 = vrot.slane %v1261, 2
    %v1263 = vadd.f32 %v1261, %v1262
    %v1264 = vrot.slane %v1263, 1
    %v1265 = vadd.f32 %v1263, %v1264
    %v1266 = vmul.f32 %v1259, %v404
    %v1267 = vmul.f32 %v1265, %v404
    %v1268 = vsub.f32 %v1208, %v1266
    %v1269 = vsub.f32 %v1210, %v1267
    %v1270 = vmul.f32 %v1268, %v1268
    %v1271 = vmul.f32 %v1269, %v1269
    %v1272 = vrot.slane %v1270, 4
    %v1273 = vadd.f32 %v1270, %v1272
    %v1274 = vrot.slane %v1273, 2
    %v1275 = vadd.f32 %v1273, %v1274
    %v1276 = vrot.slane %v1275, 1
    %v1277 = vadd.f32 %v1275, %v1276
    %v1278 = vrot.slane %v1271, 4
    %v1279 = vadd.f32 %v1271, %v1278
    %v1280 = vrot.slane %v1279, 2
    %v1281 = vadd.f32 %v1279, %v1280
    %v1282 = vrot.slane %v1281, 1
    %v1283 = vadd.f32 %v1281, %v1282
    %v1284 = vmul.f32 %v1277, %v404
    %v1285 = vmul.f32 %v1283, %v404
    %v1286 = vadd.f32 %v1284, 1e-05
    %v1287 = vadd.f32 %v1285, 1e-05
    %v1288 = vrsqrt.pop %v1286
    %v1289 = vrsqrt.pop %v1287
    %v1290 = vmul.f32 %v1268, %v1288
    %v1291 = vmul.f32 %v1269, %v1289
    %v1293 = vlaneseq
    %v1294 = vshrl.u32 %v1293, 7
    %v1295 = vsub.s32 0, %v1294
    %v1296 = vrot.slane %v1213, %v1295
    %v1297 = vlaneseq
    %v1298 = vshrl.u32 %v1297, 7
    %v1299 = vsub.s32 1, %v1298
    %v1300 = vrot.slane %v1213, %v1299
    %v1303 = vmul.f32 %v1252, %v1296
    %v1304 = vmul.f32 %v1253, %v1300
    %v1305 = vmul.f32 %v1290, %v1296
    %v1306 = vmul.f32 %v1291, %v1300
    %v1308 = vlaneseq
    %v1309 = vshrl.u32 %v1308, 7
    %v1310 = vsub.s32 0, %v1309
    %v1311 = vrot.slane %v1215, %v1310
    %v1312 = vlaneseq
    %v1313 = vshrl.u32 %v1312, 7
    %v1314 = vsub.s32 1, %v1313
    %v1315 = vrot.slane %v1215, %v1314
    %v1318 = vadd.f32 %v1303, %v1311
    %v1319 = vadd.f32 %v1304, %v1315
    %v1320 = vadd.f32 %v1305, %v1311
    %v1321 = vadd.f32 %v1306, %v1315
    %v1322 = vmul.f32 %v1318, 0.5
    %v1323 = vmul.f32 %v1319, 0.5
    %v1324 = vmul.f32 %v1320, 0.5
    %v1325 = vmul.f32 %v1321, 0.5
    %v1326 = vmul.f32 %v1318, 0.044715
    %v1327 = vmul.f32 %v1319, 0.044715
    %v1328 = vmul.f32 %v1320, 0.044715
    %v1329 = vmul.f32 %v1321, 0.044715
    %v1330 = vmul.f32 %v1326, %v1318
    %v1331 = vmul.f32 %v1327, %v1319
    %v1332 = vmul.f32 %v1328, %v1320
    %v1333 = vmul.f32 %v1329, %v1321
    %v1334 = vmul.f32 %v1330, %v1318
    %v1335 = vmul.f32 %v1331, %v1319
    %v1336 = vmul.f32 %v1332, %v1320
    %v1337 = vmul.f32 %v1333, %v1321
    %v1338 = vadd.f32 %v1318, %v1334
    %v1339 = vadd.f32 %v1319, %v1335
    %v1340 = vadd.f32 %v1320, %v1336
    %v1341 = vadd.f32 %v1321, %v1337
    %v1342 = vmul.f32 %v1338, 0.7978846
    %v1343 = vmul.f32 %v1339, 0.7978846
    %v1344 = vmul.f32 %v1340, 0.7978846
    %v1345 = vmul.f32 %v1341, 0.7978846
    %v1346 = vtanh.pop %v1342
    %v1347 = vtanh.pop %v1343
    %v1348 = vtanh.pop %v1344
    %v1349 = vtanh.pop %v1345
    %v1350 = vadd.f32 %v1346, 1.0
    %v1351 = vadd.f32 %v1347, 1.0
    %v1352 = vadd.f32 %v1348, 1.0
    %v1353 = vadd.f32 %v1349, 1.0
    %v1354 = vmul.f32 %v1322, %v1350
    %v1355 = vmul.f32 %v1323, %v1351
    %v1356 = vmul.f32 %v1324, %v1352
    %v1357 = vmul.f32 %v1325, %v1353
    %v1358 = vpack.c.bf16 %v660, %v658
    %v1359 = vpack.c.bf16 %v661, %v659
    %s1360 = scalar_lea.vmem [#allocation7], 256
    %v1361 = vld [vmem:[%s1360] sm:$0xff]
    %v1362 = vld [vmem:[%s1360 + $0x8] sm:$0xff]
    %v1363 = vld [vmem:[%s1360 + $0x10] sm:$0xff]
    %v1364 = vld [vmem:[%s1360 + $0x18] sm:$0xff]
    %v1365 = vld [vmem:[%s1360 + $0x20] sm:$0xff]
    %v1366 = vld [vmem:[%s1360 + $0x28] sm:$0xff]
    %v1367 = vld [vmem:[%s1360 + $0x30] sm:$0xff]
    %v1368 = vld [vmem:[%s1360 + $0x38] sm:$0xff]
    %v1369 = vld [vmem:[%s1360 + $0x40] sm:$0xff]
    %v1370 = vld [vmem:[%s1360 + $0x48] sm:$0xff]
    %v1371 = vld [vmem:[%s1360 + $0x50] sm:$0xff]
    %v1372 = vld [vmem:[%s1360 + $0x58] sm:$0xff]
    %v1373 = vld [vmem:[%s1360 + $0x60] sm:$0xff]
    %v1374 = vld [vmem:[%s1360 + $0x68] sm:$0xff]
    %v1375 = vld [vmem:[%s1360 + $0x70] sm:$0xff]
    %v1376 = vld [vmem:[%s1360 + $0x78] sm:$0xff]
    %v1377 = vld [vmem:[%s1360 + $0x80] sm:$0xff]
    %v1378 = vld [vmem:[%s1360 + $0x88] sm:$0xff]
    %v1379 = vld [vmem:[%s1360 + $0x90] sm:$0xff]
    %v1380 = vld [vmem:[%s1360 + $0x98] sm:$0xff]
    %v1381 = vld [vmem:[%s1360 + $0xa0] sm:$0xff]
    %v1382 = vld [vmem:[%s1360 + $0xa8] sm:$0xff]
    %v1383 = vld [vmem:[%s1360 + $0xb0] sm:$0xff]
    %v1384 = vld [vmem:[%s1360 + $0xb8] sm:$0xff]
    %v1385 = vld [vmem:[%s1360 + $0xc0] sm:$0xff]
    %v1386 = vld [vmem:[%s1360 + $0xc8] sm:$0xff]
    %v1387 = vld [vmem:[%s1360 + $0xd0] sm:$0xff]
    %v1388 = vld [vmem:[%s1360 + $0xd8] sm:$0xff]
    %v1389 = vld [vmem:[%s1360 + $0xe0] sm:$0xff]
    %v1390 = vld [vmem:[%s1360 + $0xe8] sm:$0xff]
    %v1391 = vld [vmem:[%s1360 + $0xf0] sm:$0xff]
    %v1392 = vld [vmem:[%s1360 + $0xf8] sm:$0xff]
    %s1393 = scalar_lea.vmem [#allocation10], 20
    %v1394 = vld [vmem:[%s1393] ss:$8 sm:$0x3]
    %v1396 = vlaneseq
    %v1397 = vshrl.u32 %v1396, 7
    %v1398 = vsub.s32 0, %v1397
    %v1399 = vrot.slane %v1394, %v1398
    %v1400 = vlaneseq
    %v1401 = vshrl.u32 %v1400, 7
    %v1402 = vsub.s32 1, %v1401
    %v1403 = vrot.slane %v1394, %v1402
    %v1438 = vunpack.c.l.b16 %v1361
    %v1439 = vunpack.c.h.b16 %v1361
    %v1440 = vunpack.c.l.b16 %v1362
    %v1441 = vunpack.c.h.b16 %v1362
    %v1442 = vunpack.c.l.b16 %v1363
    %v1443 = vunpack.c.h.b16 %v1363
    %v1444 = vunpack.c.l.b16 %v1364
    %v1445 = vunpack.c.h.b16 %v1364
    %v1446 = vunpack.c.l.b16 %v1365
    %v1447 = vunpack.c.h.b16 %v1365
    %v1448 = vunpack.c.l.b16 %v1366
    %v1449 = vunpack.c.h.b16 %v1366
    %v1450 = vunpack.c.l.b16 %v1367
    %v1451 = vunpack.c.h.b16 %v1367
    %v1452 = vunpack.c.l.b16 %v1368
    %v1453 = vunpack.c.h.b16 %v1368
    %v1454 = vunpack.c.l.b16 %v1369
    %v1455 = vunpack.c.h.b16 %v1369
    %v1456 = vunpack.c.l.b16 %v1370
    %v1457 = vunpack.c.h.b16 %v1370
    %v1458 = vunpack.c.l.b16 %v1371
    %v1459 = vunpack.c.h.b16 %v1371
    %v1460 = vunpack.c.l.b16 %v1372
    %v1461 = vunpack.c.h.b16 %v1372
    %v1462 = vunpack.c.l.b16 %v1373
    %v1463 = vunpack.c.h.b16 %v1373
    %v1464 = vunpack.c.l.b16 %v1374
    %v1465 = vunpack.c.h.b16 %v1374
    %v1466 = vunpack.c.l.b16 %v1375
    %v1467 = vunpack.c.h.b16 %v1375
    %v1468 = vunpack.c.l.b16 %v1376
    %v1469 = vunpack.c.h.b16 %v1376
    %v1470 = vunpack.c.l.b16 %v1377
    %v1471 = vunpack.c.h.b16 %v1377
    %v1472 = vunpack.c.l.b16 %v1378
    %v1473 = vunpack.c.h.b16 %v1378
    %v1474 = vunpack.c.l.b16 %v1379
    %v1475 = vunpack.c.h.b16 %v1379
    %v1476 = vunpack.c.l.b16 %v1380
    %v1477 = vunpack.c.h.b16 %v1380
    %v1478 = vunpack.c.l.b16 %v1381
    %v1479 = vunpack.c.h.b16 %v1381
    %v1480 = vunpack.c.l.b16 %v1382
    %v1481 = vunpack.c.h.b16 %v1382
    %v1482 = vunpack.c.l.b16 %v1383
    %v1483 = vunpack.c.h.b16 %v1383
    %v1484 = vunpack.c.l.b16 %v1384
    %v1485 = vunpack.c.h.b16 %v1384
    %v1486 = vunpack.c.l.b16 %v1385
    %v1487 = vunpack.c.h.b16 %v1385
    %v1488 = vunpack.c.l.b16 %v1386
    %v1489 = vunpack.c.h.b16 %v1386
    %v1490 = vunpack.c.l.b16 %v1387
    %v1491 = vunpack.c.h.b16 %v1387
    %v1492 = vunpack.c.l.b16 %v1388
    %v1493 = vunpack.c.h.b16 %v1388
    %v1494 = vunpack.c.l.b16 %v1389
    %v1495 = vunpack.c.h.b16 %v1389
    %v1496 = vunpack.c.l.b16 %v1390
    %v1497 = vunpack.c.h.b16 %v1390
    %v1498 = vunpack.c.l.b16 %v1391
    %v1499 = vunpack.c.h.b16 %v1391
    %v1500 = vunpack.c.l.b16 %v1392
    %v1501 = vunpack.c.h.b16 %v1392
    %v1502 = vpack.c.b16 %v1440, %v1438
    %v1503 = vpack.c.b16 %v1441, %v1439
    %v1504 = vpack.c.b16 %v1444, %v1442
    %v1505 = vpack.c.b16 %v1445, %v1443
    %v1506 = vpack.c.b16 %v1448, %v1446
    %v1507 = vpack.c.b16 %v1449, %v1447
    %v1508 = vpack.c.b16 %v1452, %v1450
    %v1509 = vpack.c.b16 %v1453, %v1451
    %v1510 = vpack.c.b16 %v1456, %v1454
    %v1511 = vpack.c.b16 %v1457, %v1455
    %v1512 = vpack.c.b16 %v1460, %v1458
    %v1513 = vpack.c.b16 %v1461, %v1459
    %v1514 = vpack.c.b16 %v1464, %v1462
    %v1515 = vpack.c.b16 %v1465, %v1463
    %v1516 = vpack.c.b16 %v1468, %v1466
    %v1517 = vpack.c.b16 %v1469, %v1467
    %v1518 = vpack.c.b16 %v1472, %v1470
    %v1519 = vpack.c.b16 %v1473, %v1471
    %v1520 = vpack.c.b16 %v1476, %v1474
    %v1521 = vpack.c.b16 %v1477, %v1475
    %v1522 = vpack.c.b16 %v1480, %v1478
    %v1523 = vpack.c.b16 %v1481, %v1479
    %v1524 = vpack.c.b16 %v1484, %v1482
    %v1525 = vpack.c.b16 %v1485, %v1483
    %v1526 = vpack.c.b16 %v1488, %v1486
    %v1527 = vpack.c.b16 %v1489, %v1487
    %v1528 = vpack.c.b16 %v1492, %v1490
    %v1529 = vpack.c.b16 %v1493, %v1491
    %v1530 = vpack.c.b16 %v1496, %v1494
    %v1531 = vpack.c.b16 %v1497, %v1495
    %v1532 = vpack.c.b16 %v1500, %v1498
    %v1533 = vpack.c.b16 %v1501, %v1499
    %1566 = vmatprep.subr.bf16.mxu0 %v1517
    %1567 = vmatpush1.bf16.msra.mxu0 %v1516
    %1568 = vmatprep.subr.bf16.mxu0 %v1515
    %1569 = vmatpush1.bf16.msra.mxu0 %v1514
    %1570 = vmatprep.subr.bf16.mxu0 %v1513
    %1571 = vmatpush1.bf16.msra.mxu0 %v1512
    %1572 = vmatprep.subr.bf16.mxu0 %v1511
    %1573 = vmatpush1.bf16.msra.mxu0 %v1510
    %1574 = vmatprep.subr.bf16.mxu0 %v1509
    %1575 = vmatpush1.bf16.msra.mxu0 %v1508
    %1576 = vmatprep.subr.bf16.mxu0 %v1507
    %1577 = vmatpush1.bf16.msra.mxu0 %v1506
    %1578 = vmatprep.subr.bf16.mxu0 %v1505
    %1579 = vmatpush1.bf16.msra.mxu0 %v1504
    %1580 = vmatprep.subr.bf16.mxu0 %v1503
    %1581 = vmatpush1.bf16.msra.mxu0 %v1502
    %1582 = vmatprep.subr.bf16.mxu0 %v1533
    %1583 = vmatpush2.bf16.msra.mxu0 %v1532
    %1584 = vmatprep.subr.bf16.mxu0 %v1531
    %1585 = vmatpush2.bf16.msra.mxu0 %v1530
    %1586 = vmatprep.subr.bf16.mxu0 %v1529
    %1587 = vmatpush2.bf16.msra.mxu0 %v1528
    %1588 = vmatprep.subr.bf16.mxu0 %v1527
    %1589 = vmatpush2.bf16.msra.mxu0 %v1526
    %1590 = vmatprep.subr.bf16.mxu0 %v1525
    %1591 = vmatpush2.bf16.msra.mxu0 %v1524
    %1592 = vmatprep.subr.bf16.mxu0 %v1523
    %1593 = vmatpush2.bf16.msra.mxu0 %v1522
    %1594 = vmatprep.subr.bf16.mxu0 %v1521
    %1595 = vmatpush2.bf16.msra.mxu0 %v1520
    %1596 = vmatprep.subr.bf16.mxu0 %v1519
    %1597 = vmatpush2.bf16.msra.mxu0 %v1518
    %1598 = vmatprep.mubr.bf16.mxu0 %v1359
    %1599 = vmatmul.mubr.bf16.gmra.mxu0 %v1358
    %v1600 = vpop.f32.mrf.mxu0
    %v1601 = vadd.f32 %v1399, %v1600
    %v1602 = vpop.f32.mrf.mxu0
    %v1603 = vadd.f32 %v1403, %v1602
    %v1604 = vpop.f32.mrf.mxu0
    %v1605 = vadd.f32 %v1399, %v1604
    %v1606 = vpop.f32.mrf.mxu0
    %v1607 = vadd.f32 %v1403, %v1606
    %1608 = vdwg.mxu0
    %s1609 = scalar_lea.vmem [#allocation10], 21
    %v1610 = vld [vmem:[%s1609] ss:$8 sm:$0x3]
    %s1611 = scalar_lea.vmem [#allocation10], 22
    %v1612 = vld [vmem:[%s1611] ss:$8 sm:$0x3]
    %v1613 = vrot.slane %v1601, 4
    %v1614 = vadd.f32 %v1601, %v1613
    %v1615 = vrot.slane %v1614, 2
    %v1616 = vadd.f32 %v1614, %v1615
    %v1617 = vrot.slane %v1616, 1
    %v1618 = vadd.f32 %v1616, %v1617
    %v1619 = vrot.slane %v1603, 4
    %v1620 = vadd.f32 %v1603, %v1619
    %v1621 = vrot.slane %v1620, 2
    %v1622 = vadd.f32 %v1620, %v1621
    %v1623 = vrot.slane %v1622, 1
    %v1624 = vadd.f32 %v1622, %v1623
    %v1625 = vmul.f32 %v1618, %v404
    %v1626 = vmul.f32 %v1624, %v404
    %v1627 = vsub.f32 %v1601, %v1625
    %v1628 = vsub.f32 %v1603, %v1626
    %v1629 = vmul.f32 %v1627, %v1627
    %v1630 = vmul.f32 %v1628, %v1628
    %v1631 = vrot.slane %v1629, 4
    %v1632 = vadd.f32 %v1629, %v1631
    %v1633 = vrot.slane %v1632, 2
    %v1634 = vadd.f32 %v1632, %v1633
    %v1635 = vrot.slane %v1634, 1
    %v1636 = vadd.f32 %v1634, %v1635
    %v1637 = vrot.slane %v1630, 4
    %v1638 = vadd.f32 %v1630, %v1637
    %v1639 = vrot.slane %v1638, 2
    %v1640 = vadd.f32 %v1638, %v1639
    %v1641 = vrot.slane %v1640, 1
    %v1642 = vadd.f32 %v1640, %v1641
    %v1643 = vmul.f32 %v1636, %v404
    %v1644 = vmul.f32 %v1642, %v404
    %v1645 = vadd.f32 %v1643, 1e-05
    %v1646 = vadd.f32 %v1644, 1e-05
    %v1647 = vrsqrt.pop %v1645
    %v1648 = vrsqrt.pop %v1646
    %v1649 = vmul.f32 %v1627, %v1647
    %v1650 = vmul.f32 %v1628, %v1648
    %v1651 = vrot.slane %v1605, 4
    %v1652 = vadd.f32 %v1605, %v1651
    %v1653 = vrot.slane %v1652, 2
    %v1654 = vadd.f32 %v1652, %v1653
    %v1655 = vrot.slane %v1654, 1
    %v1656 = vadd.f32 %v1654, %v1655
    %v1657 = vrot.slane %v1607, 4
    %v1658 = vadd.f32 %v1607, %v1657
    %v1659 = vrot.slane %v1658, 2
    %v1660 = vadd.f32 %v1658, %v1659
    %v1661 = vrot.slane %v1660, 1
    %v1662 = vadd.f32 %v1660, %v1661
    %v1663 = vmul.f32 %v1656, %v404
    %v1664 = vmul.f32 %v1662, %v404
    %v1665 = vsub.f32 %v1605, %v1663
    %v1666 = vsub.f32 %v1607, %v1664
    %v1667 = vmul.f32 %v1665, %v1665
    %v1668 = vmul.f32 %v1666, %v1666
    %v1669 = vrot.slane %v1667, 4
    %v1670 = vadd.f32 %v1667, %v1669
    %v1671 = vrot.slane %v1670, 2
    %v1672 = vadd.f32 %v1670, %v1671
    %v1673 = vrot.slane %v1672, 1
    %v1674 = vadd.f32 %v1672, %v1673
    %v1675 = vrot.slane %v1668, 4
    %v1676 = vadd.f32 %v1668, %v1675
    %v1677 = vrot.slane %v1676, 2
    %v1678 = vadd.f32 %v1676, %v1677
    %v1679 = vrot.slane %v1678, 1
    %v1680 = vadd.f32 %v1678, %v1679
    %v1681 = vmul.f32 %v1674, %v404
    %v1682 = vmul.f32 %v1680, %v404
    %v1683 = vadd.f32 %v1681, 1e-05
    %v1684 = vadd.f32 %v1682, 1e-05
    %v1685 = vrsqrt.pop %v1683
    %v1686 = vrsqrt.pop %v1684
    %v1687 = vmul.f32 %v1665, %v1685
    %v1688 = vmul.f32 %v1666, %v1686
    %v1690 = vlaneseq
    %v1691 = vshrl.u32 %v1690, 7
    %v1692 = vsub.s32 0, %v1691
    %v1693 = vrot.slane %v1610, %v1692
    %v1694 = vlaneseq
    %v1695 = vshrl.u32 %v1694, 7
    %v1696 = vsub.s32 1, %v1695
    %v1697 = vrot.slane %v1610, %v1696
    %v1700 = vmul.f32 %v1649, %v1693
    %v1701 = vmul.f32 %v1650, %v1697
    %v1702 = vmul.f32 %v1687, %v1693
    %v1703 = vmul.f32 %v1688, %v1697
    %v1705 = vlaneseq
    %v1706 = vshrl.u32 %v1705, 7
    %v1707 = vsub.s32 0, %v1706
    %v1708 = vrot.slane %v1612, %v1707
    %v1709 = vlaneseq
    %v1710 = vshrl.u32 %v1709, 7
    %v1711 = vsub.s32 1, %v1710
    %v1712 = vrot.slane %v1612, %v1711
    %v1715 = vadd.f32 %v1700, %v1708
    %v1716 = vadd.f32 %v1701, %v1712
    %v1717 = vadd.f32 %v1702, %v1708
    %v1718 = vadd.f32 %v1703, %v1712
    %v1719 = vpack.c.bf16 %v1717, %v1715
    %v1720 = vpack.c.bf16 %v1718, %v1716
    %s1721 = scalar_lea.vmem [#allocation7], 512
    %v1722 = vld [vmem:[%s1721] sm:$0xff]
    %v1723 = vld [vmem:[%s1721 + $0x8] sm:$0xff]
    %v1724 = vld [vmem:[%s1721 + $0x10] sm:$0xff]
    %v1725 = vld [vmem:[%s1721 + $0x18] sm:$0xff]
    %v1726 = vld [vmem:[%s1721 + $0x20] sm:$0xff]
    %v1727 = vld [vmem:[%s1721 + $0x28] sm:$0xff]
    %v1728 = vld [vmem:[%s1721 + $0x30] sm:$0xff]
    %v1729 = vld [vmem:[%s1721 + $0x38] sm:$0xff]
    %v1730 = vld [vmem:[%s1721 + $0x40] sm:$0xff]
    %v1731 = vld [vmem:[%s1721 + $0x48] sm:$0xff]
    %v1732 = vld [vmem:[%s1721 + $0x50] sm:$0xff]
    %v1733 = vld [vmem:[%s1721 + $0x58] sm:$0xff]
    %v1734 = vld [vmem:[%s1721 + $0x60] sm:$0xff]
    %v1735 = vld [vmem:[%s1721 + $0x68] sm:$0xff]
    %v1736 = vld [vmem:[%s1721 + $0x70] sm:$0xff]
    %v1737 = vld [vmem:[%s1721 + $0x78] sm:$0xff]
    %v1738 = vld [vmem:[%s1721 + $0x80] sm:$0xff]
    %v1739 = vld [vmem:[%s1721 + $0x88] sm:$0xff]
    %v1740 = vld [vmem:[%s1721 + $0x90] sm:$0xff]
    %v1741 = vld [vmem:[%s1721 + $0x98] sm:$0xff]
    %v1742 = vld [vmem:[%s1721 + $0xa0] sm:$0xff]
    %v1743 = vld [vmem:[%s1721 + $0xa8] sm:$0xff]
    %v1744 = vld [vmem:[%s1721 + $0xb0] sm:$0xff]
    %v1745 = vld [vmem:[%s1721 + $0xb8] sm:$0xff]
    %v1746 = vld [vmem:[%s1721 + $0xc0] sm:$0xff]
    %v1747 = vld [vmem:[%s1721 + $0xc8] sm:$0xff]
    %v1748 = vld [vmem:[%s1721 + $0xd0] sm:$0xff]
    %v1749 = vld [vmem:[%s1721 + $0xd8] sm:$0xff]
    %v1750 = vld [vmem:[%s1721 + $0xe0] sm:$0xff]
    %v1751 = vld [vmem:[%s1721 + $0xe8] sm:$0xff]
    %v1752 = vld [vmem:[%s1721 + $0xf0] sm:$0xff]
    %v1753 = vld [vmem:[%s1721 + $0xf8] sm:$0xff]
    %s1754 = scalar_lea.vmem [#allocation10], 23
    %v1755 = vld [vmem:[%s1754] ss:$8 sm:$0x3]
    %v1757 = vlaneseq
    %v1758 = vshrl.u32 %v1757, 7
    %v1759 = vsub.s32 0, %v1758
    %v1760 = vrot.slane %v1755, %v1759
    %v1761 = vlaneseq
    %v1762 = vshrl.u32 %v1761, 7
    %v1763 = vsub.s32 1, %v1762
    %v1764 = vrot.slane %v1755, %v1763
    %v1799 = vunpack.c.l.b16 %v1722
    %v1800 = vunpack.c.h.b16 %v1722
    %v1801 = vunpack.c.l.b16 %v1723
    %v1802 = vunpack.c.h.b16 %v1723
    %v1803 = vunpack.c.l.b16 %v1724
    %v1804 = vunpack.c.h.b16 %v1724
    %v1805 = vunpack.c.l.b16 %v1725
    %v1806 = vunpack.c.h.b16 %v1725
    %v1807 = vunpack.c.l.b16 %v1726
    %v1808 = vunpack.c.h.b16 %v1726
    %v1809 = vunpack.c.l.b16 %v1727
    %v1810 = vunpack.c.h.b16 %v1727
    %v1811 = vunpack.c.l.b16 %v1728
    %v1812 = vunpack.c.h.b16 %v1728
    %v1813 = vunpack.c.l.b16 %v1729
    %v1814 = vunpack.c.h.b16 %v1729
    %v1815 = vunpack.c.l.b16 %v1730
    %v1816 = vunpack.c.h.b16 %v1730
    %v1817 = vunpack.c.l.b16 %v1731
    %v1818 = vunpack.c.h.b16 %v1731
    %v1819 = vunpack.c.l.b16 %v1732
    %v1820 = vunpack.c.h.b16 %v1732
    %v1821 = vunpack.c.l.b16 %v1733
    %v1822 = vunpack.c.h.b16 %v1733
    %v1823 = vunpack.c.l.b16 %v1734
    %v1824 = vunpack.c.h.b16 %v1734
    %v1825 = vunpack.c.l.b16 %v1735
    %v1826 = vunpack.c.h.b16 %v1735
    %v1827 = vunpack.c.l.b16 %v1736
    %v1828 = vunpack.c.h.b16 %v1736
    %v1829 = vunpack.c.l.b16 %v1737
    %v1830 = vunpack.c.h.b16 %v1737
    %v1831 = vunpack.c.l.b16 %v1738
    %v1832 = vunpack.c.h.b16 %v1738
    %v1833 = vunpack.c.l.b16 %v1739
    %v1834 = vunpack.c.h.b16 %v1739
    %v1835 = vunpack.c.l.b16 %v1740
    %v1836 = vunpack.c.h.b16 %v1740
    %v1837 = vunpack.c.l.b16 %v1741
    %v1838 = vunpack.c.h.b16 %v1741
    %v1839 = vunpack.c.l.b16 %v1742
    %v1840 = vunpack.c.h.b16 %v1742
    %v1841 = vunpack.c.l.b16 %v1743
    %v1842 = vunpack.c.h.b16 %v1743
    %v1843 = vunpack.c.l.b16 %v1744
    %v1844 = vunpack.c.h.b16 %v1744
    %v1845 = vunpack.c.l.b16 %v1745
    %v1846 = vunpack.c.h.b16 %v1745
    %v1847 = vunpack.c.l.b16 %v1746
    %v1848 = vunpack.c.h.b16 %v1746
    %v1849 = vunpack.c.l.b16 %v1747
    %v1850 = vunpack.c.h.b16 %v1747
    %v1851 = vunpack.c.l.b16 %v1748
    %v1852 = vunpack.c.h.b16 %v1748
    %v1853 = vunpack.c.l.b16 %v1749
    %v1854 = vunpack.c.h.b16 %v1749
    %v1855 = vunpack.c.l.b16 %v1750
    %v1856 = vunpack.c.h.b16 %v1750
    %v1857 = vunpack.c.l.b16 %v1751
    %v1858 = vunpack.c.h.b16 %v1751
    %v1859 = vunpack.c.l.b16 %v1752
    %v1860 = vunpack.c.h.b16 %v1752
    %v1861 = vunpack.c.l.b16 %v1753
    %v1862 = vunpack.c.h.b16 %v1753
    %v1863 = vpack.c.b16 %v1801, %v1799
    %v1864 = vpack.c.b16 %v1802, %v1800
    %v1865 = vpack.c.b16 %v1805, %v1803
    %v1866 = vpack.c.b16 %v1806, %v1804
    %v1867 = vpack.c.b16 %v1809, %v1807
    %v1868 = vpack.c.b16 %v1810, %v1808
    %v1869 = vpack.c.b16 %v1813, %v1811
    %v1870 = vpack.c.b16 %v1814, %v1812
    %v1871 = vpack.c.b16 %v1817, %v1815
    %v1872 = vpack.c.b16 %v1818, %v1816
    %v1873 = vpack.c.b16 %v1821, %v1819
    %v1874 = vpack.c.b16 %v1822, %v1820
    %v1875 = vpack.c.b16 %v1825, %v1823
    %v1876 = vpack.c.b16 %v1826, %v1824
    %v1877 = vpack.c.b16 %v1829, %v1827
    %v1878 = vpack.c.b16 %v1830, %v1828
    %v1879 = vpack.c.b16 %v1833, %v1831
    %v1880 = vpack.c.b16 %v1834, %v1832
    %v1881 = vpack.c.b16 %v1837, %v1835
    %v1882 = vpack.c.b16 %v1838, %v1836
    %v1883 = vpack.c.b16 %v1841, %v1839
    %v1884 = vpack.c.b16 %v1842, %v1840
    %v1885 = vpack.c.b16 %v1845, %v1843
    %v1886 = vpack.c.b16 %v1846, %v1844
    %v1887 = vpack.c.b16 %v1849, %v1847
    %v1888 = vpack.c.b16 %v1850, %v1848
    %v1889 = vpack.c.b16 %v1853, %v1851
    %v1890 = vpack.c.b16 %v1854, %v1852
    %v1891 = vpack.c.b16 %v1857, %v1855
    %v1892 = vpack.c.b16 %v1858, %v1856
    %v1893 = vpack.c.b16 %v1861, %v1859
    %v1894 = vpack.c.b16 %v1862, %v1860
    %1927 = vmatprep.subr.bf16.mxu0 %v1878
    %1928 = vmatpush1.bf16.msra.mxu0 %v1877
    %1929 = vmatprep.subr.bf16.mxu0 %v1876
    %1930 = vmatpush1.bf16.msra.mxu0 %v1875
    %1931 = vmatprep.subr.bf16.mxu0 %v1874
    %1932 = vmatpush1.bf16.msra.mxu0 %v1873
    %1933 = vmatprep.subr.bf16.mxu0 %v1872
    %1934 = vmatpush1.bf16.msra.mxu0 %v1871
    %1935 = vmatprep.subr.bf16.mxu0 %v1870
    %1936 = vmatpush1.bf16.msra.mxu0 %v1869
    %1937 = vmatprep.subr.bf16.mxu0 %v1868
    %1938 = vmatpush1.bf16.msra.mxu0 %v1867
    %1939 = vmatprep.subr.bf16.mxu0 %v1866
    %1940 = vmatpush1.bf16.msra.mxu0 %v1865
    %1941 = vmatprep.subr.bf16.mxu0 %v1864
    %1942 = vmatpush1.bf16.msra.mxu0 %v1863
    %1943 = vmatprep.subr.bf16.mxu0 %v1894
    %1944 = vmatpush2.bf16.msra.mxu0 %v1893
    %1945 = vmatprep.subr.bf16.mxu0 %v1892
    %1946 = vmatpush2.bf16.msra.mxu0 %v1891
    %1947 = vmatprep.subr.bf16.mxu0 %v1890
    %1948 = vmatpush2.bf16.msra.mxu0 %v1889
    %1949 = vmatprep.subr.bf16.mxu0 %v1888
    %1950 = vmatpush2.bf16.msra.mxu0 %v1887
    %1951 = vmatprep.subr.bf16.mxu0 %v1886
    %1952 = vmatpush2.bf16.msra.mxu0 %v1885
    %1953 = vmatprep.subr.bf16.mxu0 %v1884
    %1954 = vmatpush2.bf16.msra.mxu0 %v1883
    %1955 = vmatprep.subr.bf16.mxu0 %v1882
    %1956 = vmatpush2.bf16.msra.mxu0 %v1881
    %1957 = vmatprep.subr.bf16.mxu0 %v1880
    %1958 = vmatpush2.bf16.msra.mxu0 %v1879
    %1959 = vmatprep.mubr.bf16.mxu0 %v1720
    %1960 = vmatmul.mubr.bf16.gmra.mxu0 %v1719
    %v1961 = vpop.f32.mrf.mxu0
    %v1962 = vadd.f32 %v1760, %v1961
    %v1963 = vpop.f32.mrf.mxu0
    %v1964 = vadd.f32 %v1764, %v1963
    %v1965 = vpop.f32.mrf.mxu0
    %v1966 = vadd.f32 %v1760, %v1965
    %v1967 = vpop.f32.mrf.mxu0
    %v1968 = vadd.f32 %v1764, %v1967
    %1969 = vdwg.mxu0
    %s1970 = scalar_lea.vmem [#allocation10], 32
    %v1971 = vld [vmem:[%s1970] ss:$8 sm:$0x3]
    %s1972 = scalar_lea.vmem [#allocation10], 33
    %v1973 = vld [vmem:[%s1972] ss:$8 sm:$0x3]
    %v1974 = vrot.slane %v1962, 4
    %v1975 = vadd.f32 %v1962, %v1974
    %v1976 = vrot.slane %v1975, 2
    %v1977 = vadd.f32 %v1975, %v1976
    %v1978 = vrot.slane %v1977, 1
    %v1979 = vadd.f32 %v1977, %v1978
    %v1980 = vrot.slane %v1964, 4
    %v1981 = vadd.f32 %v1964, %v1980
    %v1982 = vrot.slane %v1981, 2
    %v1983 = vadd.f32 %v1981, %v1982
    %v1984 = vrot.slane %v1983, 1
    %v1985 = vadd.f32 %v1983, %v1984
    %v1986 = vmul.f32 %v1979, %v404
    %v1987 = vmul.f32 %v1985, %v404
    %v1988 = vsub.f32 %v1962, %v1986
    %v1989 = vsub.f32 %v1964, %v1987
    %v1990 = vmul.f32 %v1988, %v1988
    %v1991 = vmul.f32 %v1989, %v1989
    %v1992 = vrot.slane %v1990, 4
    %v1993 = vadd.f32 %v1990, %v1992
    %v1994 = vrot.slane %v1993, 2
    %v1995 = vadd.f32 %v1993, %v1994
    %v1996 = vrot.slane %v1995, 1
    %v1997 = vadd.f32 %v1995, %v1996
    %v1998 = vrot.slane %v1991, 4
    %v1999 = vadd.f32 %v1991, %v1998
    %v2000 = vrot.slane %v1999, 2
    %v2001 = vadd.f32 %v1999, %v2000
    %v2002 = vrot.slane %v2001, 1
    %v2003 = vadd.f32 %v2001, %v2002
    %v2004 = vmul.f32 %v1997, %v404
    %v2005 = vmul.f32 %v2003, %v404
    %v2006 = vadd.f32 %v2004, 1e-05
    %v2007 = vadd.f32 %v2005, 1e-05
    %v2008 = vrsqrt.pop %v2006
    %v2009 = vrsqrt.pop %v2007
    %v2010 = vmul.f32 %v1988, %v2008
    %v2011 = vmul.f32 %v1989, %v2009
    %v2012 = vrot.slane %v1966, 4
    %v2013 = vadd.f32 %v1966, %v2012
    %v2014 = vrot.slane %v2013, 2
    %v2015 = vadd.f32 %v2013, %v2014
    %v2016 = vrot.slane %v2015, 1
    %v2017 = vadd.f32 %v2015, %v2016
    %v2018 = vrot.slane %v1968, 4
    %v2019 = vadd.f32 %v1968, %v2018
    %v2020 = vrot.slane %v2019, 2
    %v2021 = vadd.f32 %v2019, %v2020
    %v2022 = vrot.slane %v2021, 1
    %v2023 = vadd.f32 %v2021, %v2022
    %v2024 = vmul.f32 %v2017, %v404
    %v2025 = vmul.f32 %v2023, %v404
    %v2026 = vsub.f32 %v1966, %v2024
    %v2027 = vsub.f32 %v1968, %v2025
    %v2028 = vmul.f32 %v2026, %v2026
    %v2029 = vmul.f32 %v2027, %v2027
    %v2030 = vrot.slane %v2028, 4
    %v2031 = vadd.f32 %v2028, %v2030
    %v2032 = vrot.slane %v2031, 2
    %v2033 = vadd.f32 %v2031, %v2032
    %v2034 = vrot.slane %v2033, 1
    %v2035 = vadd.f32 %v2033, %v2034
    %v2036 = vrot.slane %v2029, 4
    %v2037 = vadd.f32 %v2029, %v2036
    %v2038 = vrot.slane %v2037, 2
    %v2039 = vadd.f32 %v2037, %v2038
    %v2040 = vrot.slane %v2039, 1
    %v2041 = vadd.f32 %v2039, %v2040
    %v2042 = vmul.f32 %v2035, %v404
    %v2043 = vmul.f32 %v2041, %v404
    %v2044 = vadd.f32 %v2042, 1e-05
    %v2045 = vadd.f32 %v2043, 1e-05
    %v2046 = vrsqrt.pop %v2044
    %v2047 = vrsqrt.pop %v2045
    %v2048 = vmul.f32 %v2026, %v2046
    %v2049 = vmul.f32 %v2027, %v2047
    %v2051 = vlaneseq
    %v2052 = vshrl.u32 %v2051, 7
    %v2053 = vsub.s32 0, %v2052
    %v2054 = vrot.slane %v1971, %v2053
    %v2055 = vlaneseq
    %v2056 = vshrl.u32 %v2055, 7
    %v2057 = vsub.s32 1, %v2056
    %v2058 = vrot.slane %v1971, %v2057
    %v2061 = vmul.f32 %v2010, %v2054
    %v2062 = vmul.f32 %v2011, %v2058
    %v2063 = vmul.f32 %v2048, %v2054
    %v2064 = vmul.f32 %v2049, %v2058
    %v2066 = vlaneseq
    %v2067 = vshrl.u32 %v2066, 7
    %v2068 = vsub.s32 0, %v2067
    %v2069 = vrot.slane %v1973, %v2068
    %v2070 = vlaneseq
    %v2071 = vshrl.u32 %v2070, 7
    %v2072 = vsub.s32 1, %v2071
    %v2073 = vrot.slane %v1973, %v2072
    %v2076 = vadd.f32 %v2061, %v2069
    %v2077 = vadd.f32 %v2062, %v2073
    %v2078 = vadd.f32 %v2063, %v2069
    %v2079 = vadd.f32 %v2064, %v2073
    %v2080 = vmul.f32 %v1354, 10000.0
    %v2081 = vmul.f32 %v1355, 10000.0
    %v2082 = vmul.f32 %v1356, 10000.0
    %v2083 = vmul.f32 %v1357, 10000.0
    %v2084 = vmax.f32 %v2080, %v2081
    %2085 = vmax.xlane.f32.xlu0 %v2084
    %v2086 = vpop.xlane.xlu0 %2085
    %v2087 = vmax.f32 %v2082, %v2083
    %2088 = vmax.xlane.f32.xlu0 %v2087
    %v2089 = vpop.xlane.xlu0 %2088
    %v2090 = vsub.f32 %v2080, %v2086
    %v2091 = vsub.f32 %v2081, %v2086
    %v2092 = vsub.f32 %v2082, %v2089
    %v2093 = vsub.f32 %v2083, %v2089
    %v2094 = vmul.f32 %v2090, 1.442695
    %v2095 = vpow.pop %v2094
    %v2096 = vmul.f32 %v2091, 1.442695
    %v2097 = vpow.pop %v2096
    %v2098 = vmul.f32 %v2092, 1.442695
    %v2099 = vpow.pop %v2098
    %v2100 = vmul.f32 %v2093, 1.442695
    %v2101 = vpow.pop %v2100
    %v2102 = vadd.f32 %v2095, %v2097
    %2103 = vadd.xlane.f32.xlu0 %v2102
    %v2104 = vpop.xlane.xlu0 %2103
    %v2105 = vadd.f32 %v2099, %v2101
    %2106 = vadd.xlane.f32.xlu0 %v2105
    %v2107 = vpop.xlane.xlu0 %2106
    %v2108 = vrcp.pop %v2104
    %v2109 = vrcp.pop %v2107
    %v2110 = vmul.f32 %v2095, %v2108
    %v2111 = vmul.f32 %v2097, %v2108
    %v2112 = vmul.f32 %v2099, %v2109
    %v2113 = vmul.f32 %v2101, %v2109
    %v2114 = vlog2.pop %v2104
    %v2115 = vmul.f32 %v2114, 0.6931472
    %v2116 = vlog2.pop %v2107
    %v2117 = vmul.f32 %v2116, 0.6931472
    %v2118 = vsub.f32 %v2090, %v2115
    %v2119 = vsub.f32 %v2091, %v2115
    %v2120 = vsub.f32 %v2092, %v2117
    %v2121 = vsub.f32 %v2093, %v2117
    %v2122 = vmax.f32 %v2076, %v2077
    %2123 = vmax.xlane.f32.xlu0 %v2122
    %v2124 = vpop.xlane.xlu0 %2123
    %v2125 = vmax.f32 %v2078, %v2079
    %2126 = vmax.xlane.f32.xlu0 %v2125
    %v2127 = vpop.xlane.xlu0 %2126
    %v2128 = vsub.f32 %v2076, %v2124
    %v2129 = vsub.f32 %v2077, %v2124
    %v2130 = vsub.f32 %v2078, %v2127
    %v2131 = vsub.f32 %v2079, %v2127
    %v2132 = vmul.f32 %v2128, 1.442695
    %v2133 = vpow.pop %v2132
    %v2134 = vmul.f32 %v2129, 1.442695
    %v2135 = vpow.pop %v2134
    %v2136 = vmul.f32 %v2130, 1.442695
    %v2137 = vpow.pop %v2136
    %v2138 = vmul.f32 %v2131, 1.442695
    %v2139 = vpow.pop %v2138
    %v2140 = vadd.f32 %v2133, %v2135
    %2141 = vadd.xlane.f32.xlu0 %v2140
    %v2142 = vpop.xlane.xlu0 %2141
    %v2143 = vadd.f32 %v2137, %v2139
    %2144 = vadd.xlane.f32.xlu0 %v2143
    %v2145 = vpop.xlane.xlu0 %2144
    %v2146 = vlog2.pop %v2142
    %v2147 = vmul.f32 %v2146, 0.6931472
    %v2148 = vlog2.pop %v2145
    %v2149 = vmul.f32 %v2148, 0.6931472
    %v2150 = vsub.f32 %v2128, %v2147
    %v2151 = vsub.f32 %v2129, %v2147
    %v2152 = vsub.f32 %v2130, %v2149
    %v2153 = vsub.f32 %v2131, %v2149
    %v2154 = vrot.slane %v2110, 4
    %v2155 = vadd.f32 %v2110, %v2154
    %v2156 = vrot.slane %v2155, 2
    %v2157 = vadd.f32 %v2155, %v2156
    %v2158 = vrot.slane %v2157, 1
    %v2159 = vadd.f32 %v2157, %v2158
    %v2160 = vrot.slane %v2111, 4
    %v2161 = vadd.f32 %v2111, %v2160
    %v2162 = vrot.slane %v2161, 2
    %v2163 = vadd.f32 %v2161, %v2162
    %v2164 = vrot.slane %v2163, 1
    %v2165 = vadd.f32 %v2163, %v2164
    %v2166 = vmul.f32 %v2159, %v404
    %v2167 = vmul.f32 %v2165, %v404
    %v2168 = vmax.f32 %v2166, 1.1754944e-38
    %v2169 = vmax.f32 %v2167, 1.1754944e-38
    %v2170 = vlog2.pop %v2168
    %v2171 = vmul.f32 %v2170, 0.6931472
    %v2172 = vlog2.pop %v2169
    %v2173 = vmul.f32 %v2172, 0.6931472
    %v2174 = vmul.f32 %v2166, %v2171
    %v2175 = vmul.f32 %v2167, %v2173
    %vm2176 = vcmask 1040384
    %v2177 = vsel %vm2176, %v2174, 0.0
    %v2178 = vsel %vm2176, %v2175, 0.0
    %v2179 = vadd.f32 %v2177, %v2178
    %2180 = vadd.xlane.f32.xlu0 %v2179
    %v2181 = vpop.xlane.xlu0 %2180
    %v2182 = vrot.slane %v2181, 4
    %v2183 = vadd.f32 %v2181, %v2182
    %v2184 = vrot.slane %v2183, 2
    %v2185 = vadd.f32 %v2183, %v2184
    %v2186 = vrot.slane %v2185, 1
    %v2187 = vadd.f32 %v2185, %v2186
    %s2188 = vtos %v2187
    %v2189 = vmul.f32 %v2110, %v2120
    %v2190 = vmul.f32 %v2111, %v2121
    %v2191 = vadd.f32 %v2189, %v2190
    %2192 = vadd.xlane.f32.xlu0 %v2191
    %v2193 = vpop.xlane.xlu0 %2192
    %vm2194 = vcmask 7168
    %v2195 = vsel %vm2194, %v2193, 0.0
    %2196 = vadd.xlane.f32.xlu0 %v2195
    %v2197 = vpop.xlane.xlu0 %2196
    %v2198 = vrot.slane %v2197, 4
    %v2199 = vadd.f32 %v2197, %v2198
    %v2200 = vrot.slane %v2199, 2
    %v2201 = vadd.f32 %v2199, %v2200
    %v2202 = vrot.slane %v2201, 1
    %v2203 = vadd.f32 %v2201, %v2202
    %s2204 = vtos %v2203
    %v2205 = vrcp.pop 8.0
    %s2206 = vtos %v2205
    %s2207 = smul.f32 %s2204, %s2206
    %v2208 = vmul.f32 %v2110, %v2152
    %v2209 = vmul.f32 %v2111, %v2153
    %v2210 = vadd.f32 %v2208, %v2209
    %2211 = vadd.xlane.f32.xlu0 %v2210
    %v2212 = vpop.xlane.xlu0 %2211
    %v2213 = vsel %vm2194, %v2212, 0.0
    %2214 = vadd.xlane.f32.xlu0 %v2213
    %v2215 = vpop.xlane.xlu0 %2214
    %v2216 = vrot.slane %v2215, 4
    %v2217 = vadd.f32 %v2215, %v2216
    %v2218 = vrot.slane %v2217, 2
    %v2219 = vadd.f32 %v2217, %v2218
    %v2220 = vrot.slane %v2219, 1
    %v2221 = vadd.f32 %v2219, %v2220
    %s2222 = vtos %v2221
    %v2223 = vrcp.pop 8.0
    %s2224 = vtos %v2223
    %s2225 = smul.f32 %s2222, %s2224
    %s2226 = smul.f32 %s2188, 2.3
    %s2227 = smul.f32 %s2207, 0.8
    %s2228 = ssub.f32 %s2226, %s2227
    %s2229 = ssub.f32 %s2228, %s2225
    %v2230 = vrot.slane %v2112, 4
    %v2231 = vadd.f32 %v2112, %v2230
    %v2232 = vrot.slane %v2231, 2
    %v2233 = vadd.f32 %v2231, %v2232
    %v2234 = vrot.slane %v2233, 1
    %v2235 = vadd.f32 %v2233, %v2234
    %v2236 = vrot.slane %v2113, 4
    %v2237 = vadd.f32 %v2113, %v2236
    %v2238 = vrot.slane %v2237, 2
    %v2239 = vadd.f32 %v2237, %v2238
    %v2240 = vrot.slane %v2239, 1
    %v2241 = vadd.f32 %v2239, %v2240
    %v2242 = vmul.f32 %v2235, %v404
    %v2243 = vmul.f32 %v2241, %v404
    %v2244 = vmax.f32 %v2242, 1.1754944e-38
    %v2245 = vmax.f32 %v2243, 1.1754944e-38
    %v2246 = vlog2.pop %v2244
    %v2247 = vmul.f32 %v2246, 0.6931472
    %v2248 = vlog2.pop %v2245
    %v2249 = vmul.f32 %v2248, 0.6931472
    %v2250 = vmul.f32 %v2242, %v2247
    %v2251 = vmul.f32 %v2243, %v2249
    %v2252 = vsel %vm2176, %v2250, 0.0
    %v2253 = vsel %vm2176, %v2251, 0.0
    %v2254 = vadd.f32 %v2252, %v2253
    %2255 = vadd.xlane.f32.xlu0 %v2254
    %v2256 = vpop.xlane.xlu0 %2255
    %v2257 = vrot.slane %v2256, 4
    %v2258 = vadd.f32 %v2256, %v2257
    %v2259 = vrot.slane %v2258, 2
    %v2260 = vadd.f32 %v2258, %v2259
    %v2261 = vrot.slane %v2260, 1
    %v2262 = vadd.f32 %v2260, %v2261
    %s2263 = vtos %v2262
    %v2264 = vmul.f32 %v2112, %v2118
    %v2265 = vmul.f32 %v2113, %v2119
    %v2266 = vadd.f32 %v2264, %v2265
    %2267 = vadd.xlane.f32.xlu0 %v2266
    %v2268 = vpop.xlane.xlu0 %2267
    %v2269 = vsel %vm2194, %v2268, 0.0
    %2270 = vadd.xlane.f32.xlu0 %v2269
    %v2271 = vpop.xlane.xlu0 %2270
    %v2272 = vrot.slane %v2271, 4
    %v2273 = vadd.f32 %v2271, %v2272
    %v2274 = vrot.slane %v2273, 2
    %v2275 = vadd.f32 %v2273, %v2274
    %v2276 = vrot.slane %v2275, 1
    %v2277 = vadd.f32 %v2275, %v2276
    %s2278 = vtos %v2277
    %v2279 = vrcp.pop 8.0
    %s2280 = vtos %v2279
    %s2281 = smul.f32 %s2278, %s2280
    %v2282 = vmul.f32 %v2112, %v2150
    %v2283 = vmul.f32 %v2113, %v2151
    %v2284 = vadd.f32 %v2282, %v2283
    %2285 = vadd.xlane.f32.xlu0 %v2284
    %v2286 = vpop.xlane.xlu0 %2285
    %v2287 = vsel %vm2194, %v2286, 0.0
    %2288 = vadd.xlane.f32.xlu0 %v2287
    %v2289 = vpop.xlane.xlu0 %2288
    %v2290 = vrot.slane %v2289, 4
    %v2291 = vadd.f32 %v2289, %v2290
    %v2292 = vrot.slane %v2291, 2
    %v2293 = vadd.f32 %v2291, %v2292
    %v2294 = vrot.slane %v2293, 1
    %v2295 = vadd.f32 %v2293, %v2294
    %s2296 = vtos %v2295
    %v2297 = vrcp.pop 8.0
    %s2298 = vtos %v2297
    %s2299 = smul.f32 %s2296, %s2298
    %s2300 = smul.f32 %s2263, 2.3
    %s2301 = smul.f32 %s2281, 0.8
    %s2302 = ssub.f32 %s2300, %s2301
    %s2303 = ssub.f32 %s2302, %s2299
    %s2304 = sadd.f32 %s2229, %s2303
    %s2305 = smul.f32 %s2304, 0.5
    %s2306 = scalar_lea.smem [#allocation11], 0
    %2307 = sst [smem:[%s2306]] %s2305
    // Predicated region
    $region46: #{dissl_forward.1} parent=1 // pred_check
      _
    $region47: #{dissl_forward.1} parent=1 // pred_check_branch
      %2309 = sbr.rel (0) target = $region49
    $region48: #{dissl_forward.1} parent=1 // pred_region
      %s2311 = ssub.s32 16, 16
      %2312 = vsyncadd [#allocation4], %s2311
      %2315 = dma.smem_to_hbm [#allocation11], 16, %s6, [#allocation4]
    $region49: #{dissl_forward.1} parent=1 // pred_fallthru
      _
    // Predicated region
    $region50: #{dissl_forward.1} parent=1 // pred_check
      _
    $region51: #{dissl_forward.1} parent=1 // pred_check_branch
      %2317 = sbr.rel (0) target = $region53
    $region52: #{dissl_forward.1} parent=1 // pred_region
      %2318 = dma.done [#allocation4], 16
    $region53: #{dissl_forward.1} parent=1 // pred_fallthru
      _
    %2319 = sfence
    %2320 = vsyncpa [#allocation3], 1
    %2321 = vsyncpa [#allocation6], 1
    %2322 = vsyncpa [#allocation9], 1
    %2323 = vsyncpa [#allocation4], 1

</llo_original>
